<compile_context>
chip_gen: v7x
topology: tpu7x:2x2x1
jax: 0.10.0
libtpu: 0.0.40
codegen_flags: <defaults>
</compile_context>

<pallas_src>
import functools
import math

import jax
import jax.numpy as jnp
from jax.experimental import pallas as pl
from jax.experimental.pallas import tpu as pltpu


# ----------------------------------------------------------------------------
# Pallas kernel: whole sequence in one invocation
# ----------------------------------------------------------------------------
def lstm_multi_kernel(x_ref,                        # (S1*B, D)   embedded inputs (matmul dtype)
                      tgt_ref,                      # (S1*B, 1)   int32 target ids
                      wih1_ref, whh1_ref, b1_ref,   # (D,4H) mm-dtype, (H,4H) f32, (1,4H) f32
                      wih2_ref, whh2_ref, b2_ref,   # (H,4H) mm-dtype, (H,4H) f32, (1,4H) f32
                      ws_ref, bs_ref,               # (H,V) mm-dtype, (1,V) f32
                      loss_ref,                     # (1,1) f32 output
                      gx_ref,                       # (S1*B, 4H) f32 scratch (reused by both layers)
                      h1_ref, h2_ref,               # (S1*B, H)  f32 scratch (per-step hidden states)
                      *, batch, seq_len):
    B, S1 = batch, seq_len
    H = whh1_ref.shape[0]
    V = ws_ref.shape[1]
    f32 = jnp.float32

    # ---- Pass 0: batched layer-1 input projection (bias folded), one MXU matmul.
    gx_ref[...] = (jnp.dot(x_ref[...], wih1_ref[...], preferred_element_type=f32)
                   + b1_ref[...])                                    # (S1*B, 4H) f32

    def run_layer(whh, hout_ref):
        """Serial recurrence: g[t] = gx[t] + h @ Whh; writes h[t] to hout_ref."""
        def step(t, carry):
            h, c = carry
            row = pl.multiple_of(t * B, B)                           # sublane-aligned
            g = gx_ref[pl.ds(row, B), :] + jnp.dot(
                h, whh, preferred_element_type=f32)                  # (B, 4H) f32
            # Full-vreg EUP calls (gates laid out i|f|g|o along lanes).
            sg = jax.nn.sigmoid(g)
            tg = jnp.tanh(g)
            c = sg[:, H:2 * H] * c + sg[:, 0:H] * tg[:, 2 * H:3 * H]
            h = sg[:, 3 * H:4 * H] * jnp.tanh(c)
            hout_ref[pl.ds(row, B), :] = h                           # consumed after the loop
            return h, c

        z = jnp.zeros((B, H), f32)
        jax.lax.fori_loop(0, S1, step, (z, z), unroll=min(S1, 8))

    # ---- Pass 1: layer-1 recurrence (f32; only h @ Whh1 on the serial path).
    run_layer(whh1_ref[...], h1_ref)

    # ---- Pass 2: batched layer-2 input projection, reusing the gx scratch.
    gx_ref[...] = (jnp.dot(h1_ref[...].astype(wih2_ref.dtype), wih2_ref[...],
                           preferred_element_type=f32)
                   + b2_ref[...])                                    # (S1*B, 4H) f32

    # ---- Pass 3: layer-2 recurrence.
    run_layer(whh2_ref[...], h2_ref)

    # ---- Pass 4 (epilogue): scorer + summed cross-entropy, fully batched.
    scores = (jnp.dot(h2_ref[...].astype(ws_ref.dtype), ws_ref[...],
                      preferred_element_type=f32)
              + bs_ref[...])                                         # (S1*B, V) f32
    m = jnp.max(scores, axis=-1, keepdims=True)
    lse = m + jnp.log(jnp.sum(jnp.exp(scores - m), axis=-1, keepdims=True))
    col = jax.lax.broadcasted_iota(jnp.int32, (S1 * B, V), 1)
    tgt_logit = jnp.sum(jnp.where(col == tgt_ref[...], scores, 0.0),
                        axis=-1, keepdims=True)                      # (S1*B, 1)
    loss_ref[...] = jnp.sum(lse - tgt_logit, keepdims=True)          # (1, 1)


# ----------------------------------------------------------------------------
# Wrapper: embedding lookup / weight repacking in plain JAX, hot path in Pallas
# ----------------------------------------------------------------------------
def lstm_multi_forward(tokens, params, matmul_dtype=jnp.bfloat16):
    """tokens: (seq_len, batch) int32.  Returns (loss, loss) like the PyTorch module.

    matmul_dtype applies ONLY to the batched (non-recurrent) matmul operands
    (x, Wih1, Wih2, Ws); the recurrent matmuls, cell state, gate math and the
    softmax are always f32, and MXU accumulation is always f32.
    """
    emb_tab = params["emb"]                       # (x_dim, word_dim)
    x_dim = emb_tab.shape[0]
    S, B = tokens.shape
    S1 = S - 1

    emb = emb_tab[tokens[:-1]]                    # (S1, B, D); lockdrop == identity (eval)
    D = emb.shape[-1]
    H = params["whh1"].shape[1]
    V = x_dim

    x2d = emb.reshape(S1 * B, D).astype(matmul_dtype)            # (S1*B, D)
    tgt = tokens[1:].reshape(S1 * B, 1).astype(jnp.int32)        # (S1*B, 1) int ids

    # Pre-transpose to MXU-friendly (in_features, out_features); fold bias pairs.
    # Batched-matmul operands -> matmul_dtype; recurrent Whh stays f32.
    wih1 = params["wih1"].T.astype(matmul_dtype)                 # (D, 4H)
    whh1 = params["whh1"].T.astype(jnp.float32)                  # (H, 4H)
    b1 = (params["bih1"] + params["bhh1"])[None, :]              # (1, 4H) f32
    wih2 = params["wih2"].T.astype(matmul_dtype)                 # (H, 4H)
    whh2 = params["whh2"].T.astype(jnp.float32)                  # (H, 4H)
    b2 = (params["bih2"] + params["bhh2"])[None, :]              # (1, 4H) f32
    ws = params["ws"].T.astype(matmul_dtype)                     # (H, V)
    bs = params["bs"][None, :]                                   # (1, V) f32

    kernel = functools.partial(lstm_multi_kernel, batch=B, seq_len=S1)
    vmem = pl.BlockSpec(memory_space=pltpu.MemorySpace.VMEM)

    # All buffers fit comfortably in the default scoped VMEM at these sizes.
    # For larger H / V / S, raise vmem_limit_bytes (v6e) or tile the scorer over
    # V with an online logsumexp (v7x, 64 MiB VMEM).
    loss = pl.pallas_call(
        kernel,
        out_shape=jax.ShapeDtypeStruct((1, 1), jnp.float32),
        in_specs=[vmem] * 10,
        out_specs=pl.BlockSpec(memory_space=pltpu.MemorySpace.VMEM),
        scratch_shapes=[
            pltpu.VMEM((S1 * B, 4 * H), jnp.float32),   # gx (shared by both layers)
            pltpu.VMEM((S1 * B, H), jnp.float32),       # h1[t] for all t
            pltpu.VMEM((S1 * B, H), jnp.float32),       # h2[t] for all t
        ],
    )(x2d, tgt, wih1, whh1, b1, wih2, whh2, b2, ws, bs)

    loss = loss[0, 0]
    return loss, loss     # matches PyTorch's (loss, loss.data.sum())


# ----------------------------------------------------------------------------
# Deterministic parameter init (matches shapes / init scheme of the module)
# ----------------------------------------------------------------------------
def init_params(key, x_dim, hidden, word_dim):
    ks = jax.random.split(key, 12)
    u = lambda k, shape, a: jax.random.uniform(k, shape, jnp.float32, -a, a)
    klstm = 1.0 / math.sqrt(hidden)
    return {
        "emb":  u(ks[0], (x_dim, word_dim), 0.1),
        # nn.LSTM(word_dim, hidden)
        "wih1": u(ks[1], (4 * hidden, word_dim), klstm),
        "whh1": u(ks[2], (4 * hidden, hidden), klstm),
        "bih1": u(ks[3], (4 * hidden,), klstm),
        "bhh1": u(ks[4], (4 * hidden,), klstm),
        # nn.LSTM(hidden, hidden)
        "wih2": u(ks[5], (4 * hidden, hidden), klstm),
        "whh2": u(ks[6], (4 * hidden, hidden), klstm),
        "bih2": u(ks[7], (4 * hidden,), klstm),
        "bhh2": u(ks[8], (4 * hidden,), klstm),
        # nn.Linear(hidden, x_dim); weight uniform(-0.1, 0.1), bias zero
        "ws":   u(ks[9], (x_dim, hidden), 0.1),
        "bs":   jnp.zeros((x_dim,), jnp.float32),
    }


# ----------------------------------------------------------------------------
# Pure-JAX reference (same math) for correctness check
# ----------------------------------------------------------------------------
def reference_forward(tokens, p):
    emb = p["emb"][tokens]
    x = emb[:-1]
    B = x.shape[1]
    H = p["whh1"].shape[1]

    def run_lstm(seq, wih, whh, bih, bhh):
        def step(carry, xt):
            h, c = carry
            g = xt @ wih.T + h @ whh.T + bih + bhh
            i, f, gg, o = jnp.split(g, 4, axis=-1)
            c = jax.nn.sigmoid(f) * c + jax.nn.sigmoid(i) * jnp.tanh(gg)
            h = jax.nn.sigmoid(o) * jnp.tanh(c)
            return (h, c), h
        init = (jnp.zeros((B, H), jnp.float32), jnp.zeros((B, H), jnp.float32))
        _, hs = jax.lax.scan(step, init, seq)
        return hs

    h1 = run_lstm(x, p["wih1"], p["whh1"], p["bih1"], p["bhh1"])
    h2 = run_lstm(h1, p["wih2"], p["whh2"], p["bih2"], p["bhh2"])
    scores = h2.reshape(-1, H) @ p["ws"].T + p["bs"]
    tgt = tokens[1:].reshape(-1)
    logp = jax.nn.log_softmax(scores, axis=-1)
    return -jnp.sum(logp[jnp.arange(tgt.shape[0]), tgt])


if __name__ == "__main__":
    X_DIM, HIDDEN, WORD_DIM = 64, 32, 32
    SEQ_LEN, BATCH = 9, 8            # seq_len - 1 = 8 recurrent steps

    key = jax.random.PRNGKey(0)
    pkey, tkey = jax.random.split(key)
    params = init_params(pkey, X_DIM, HIDDEN, WORD_DIM)
    tokens = jax.random.randint(tkey, (SEQ_LEN, BATCH), 0, X_DIM, dtype=jnp.int32)

    ref = jax.block_until_ready(reference_forward(tokens, params))

    # Fast path: bf16 batched-matmul operands (f32 recurrence / gates / softmax).
    loss_bf16, _ = lstm_multi_forward(tokens, params, matmul_dtype=jnp.bfloat16)
    loss_bf16 = jax.block_until_ready(loss_bf16)
    assert jnp.allclose(loss_bf16, ref, rtol=2e-2, atol=0.0), (loss_bf16, ref)

    # Bit-faithful path: everything f32, tight tolerance against the reference.
    loss_f32, _ = lstm_multi_forward(tokens, params, matmul_dtype=jnp.float32)
    loss_f32 = jax.block_until_ready(loss_f32)
    assert jnp.allclose(loss_f32, ref, rtol=1e-4, atol=1e-3), (loss_f32, ref)

    print("KERNEL_OK")
</pallas_src>

<mosaic_0001>
module attributes {stable_mosaic.version = 11 : i64} {
  func.func @lstm_multi_kernel(%arg0: memref<64x32xbf16, #tpu.memory_space<vmem>>, %arg1: memref<64x1xi32, #tpu.memory_space<vmem>>, %arg2: memref<32x128xbf16, #tpu.memory_space<vmem>>, %arg3: memref<32x128xf32, #tpu.memory_space<vmem>>, %arg4: memref<1x128xf32, #tpu.memory_space<vmem>>, %arg5: memref<32x128xbf16, #tpu.memory_space<vmem>>, %arg6: memref<32x128xf32, #tpu.memory_space<vmem>>, %arg7: memref<1x128xf32, #tpu.memory_space<vmem>>, %arg8: memref<32x64xbf16, #tpu.memory_space<vmem>>, %arg9: memref<1x64xf32, #tpu.memory_space<vmem>>, %arg10: memref<1x1xf32, #tpu.memory_space<vmem>>, %arg11: memref<64x128xf32, #tpu.memory_space<vmem>>, %arg12: memref<64x32xf32, #tpu.memory_space<vmem>>, %arg13: memref<64x32xf32, #tpu.memory_space<vmem>>) attributes {dimension_semantics = [], scalar_prefetch = 0 : i64, scratch_operands = 3 : i64, tpu.core_type = #tpu.core_type<tc>} {
    %c0 = arith.constant 0 : index
    %c0_0 = arith.constant 0 : index
    %0 = vector.load %arg0[%c0, %c0_0] : memref<64x32xbf16, #tpu.memory_space<vmem>>, vector<64x32xbf16>
    %c0_1 = arith.constant 0 : index
    %c0_2 = arith.constant 0 : index
    %1 = vector.load %arg2[%c0_1, %c0_2] : memref<32x128xbf16, #tpu.memory_space<vmem>>, vector<32x128xbf16>
    %cst = arith.constant dense<0.000000e+00> : vector<64x128xf32>
    %2 = tpu.matmul %0, %1, %cst {dimension_numbers = #tpu.dot_dimension_numbers<[1], [0], [0], [1], [0, 0, 1, 1], [], []>} : vector<64x32xbf16>, vector<32x128xbf16>, vector<64x128xf32> -> vector<64x128xf32>
    %c0_3 = arith.constant 0 : index
    %c0_4 = arith.constant 0 : index
    %3 = vector.load %arg4[%c0_3, %c0_4] : memref<1x128xf32, #tpu.memory_space<vmem>>, vector<1x128xf32>
    %4 = vector.broadcast %3 : vector<1x128xf32> to vector<64x128xf32>
    %5 = arith.addf %2, %4 : vector<64x128xf32>
    %c0_5 = arith.constant 0 : index
    %c0_6 = arith.constant 0 : index
    %6 = vector.load %arg11[%c0_5, %c0_6] : memref<64x128xf32, #tpu.memory_space<vmem>>, vector<64x128xf32>
    tpu.vector_store %arg11[%c0_5, %c0_6], %5 {strides = array<i32>} : memref<64x128xf32, #tpu.memory_space<vmem>>, vector<64x128xf32>,
    %c0_7 = arith.constant 0 : index
    %c0_8 = arith.constant 0 : index
    %7 = vector.load %arg3[%c0_7, %c0_8] : memref<32x128xf32, #tpu.memory_space<vmem>>, vector<32x128xf32>
    %cst_9 = arith.constant 0.000000e+00 : f32
    %8 = vector.broadcast %cst_9 : f32 to vector<8x32xf32>
    %c0_i32 = arith.constant 0 : i32
    %c8_i32 = arith.constant 8 : i32
    %9 = arith.muli %c0_i32, %c8_i32 : i32
    %10 = tpu.assume_multiple %9, 8 : i32
    %11 = arith.index_cast %10 : i32 to index
    %c0_10 = arith.constant 0 : index
    %12 = vector.load %arg11[%11, %c0_10] : memref<64x128xf32, #tpu.memory_space<vmem>>, vector<8x128xf32>
    %cst_11 = arith.constant dense<0.000000e+00> : vector<8x128xf32>
    %13 = tpu.matmul %8, %7, %cst_11 {dimension_numbers = #tpu.dot_dimension_numbers<[1], [0], [0], [1], [0, 0, 1, 1], [], []>} : vector<8x32xf32>, vector<32x128xf32>, vector<8x128xf32> -> vector<8x128xf32>
    %14 = arith.addf %12, %13 : vector<8x128xf32>
    %15 = arith.negf %14 : vector<8x128xf32>
    %16 = math.exp %15 : vector<8x128xf32>
    %cst_12 = arith.constant 1.000000e+00 : f32
    %17 = vector.broadcast %cst_12 : f32 to vector<8x128xf32>
    %18 = arith.addf %17, %16 : vector<8x128xf32>
    %19 = arith.divf %17, %18 : vector<8x128xf32>
    %20 = math.tanh %14 : vector<8x128xf32>
    %21 = vector.extract_strided_slice %19 {offsets = [0, 32], sizes = [8, 32], strides = [1, 1]} : vector<8x128xf32> to vector<8x32xf32>
    %22 = arith.mulf %21, %8 : vector<8x32xf32>
    %23 = vector.extract_strided_slice %19 {offsets = [0, 0], sizes = [8, 32], strides = [1, 1]} : vector<8x128xf32> to vector<8x32xf32>
    %24 = vector.extract_strided_slice %20 {offsets = [0, 64], sizes = [8, 32], strides = [1, 1]} : vector<8x128xf32> to vector<8x32xf32>
    %25 = arith.mulf %23, %24 : vector<8x32xf32>
    %26 = arith.addf %22, %25 : vector<8x32xf32>
    %27 = vector.extract_strided_slice %19 {offsets = [0, 96], sizes = [8, 32], strides = [1, 1]} : vector<8x128xf32> to vector<8x32xf32>
    %28 = math.tanh %26 : vector<8x32xf32>
    %29 = arith.mulf %27, %28 : vector<8x32xf32>
    %30 = arith.index_cast %10 : i32 to index
    %c0_13 = arith.constant 0 : index
    %31 = vector.load %arg12[%30, %c0_13] : memref<64x32xf32, #tpu.memory_space<vmem>>, vector<8x32xf32>
    tpu.vector_store %arg12[%30, %c0_13], %29 {strides = array<i32>} : memref<64x32xf32, #tpu.memory_space<vmem>>, vector<8x32xf32>,
    %c1_i32 = arith.constant 1 : i32
    %c8_i32_14 = arith.constant 8 : i32
    %32 = arith.muli %c1_i32, %c8_i32_14 : i32
    %33 = tpu.assume_multiple %32, 8 : i32
    %34 = arith.index_cast %33 : i32 to index
    %c0_15 = arith.constant 0 : index
    %35 = vector.load %arg11[%34, %c0_15] : memref<64x128xf32, #tpu.memory_space<vmem>>, vector<8x128xf32>
    %cst_16 = arith.constant dense<0.000000e+00> : vector<8x128xf32>
    %36 = tpu.matmul %29, %7, %cst_16 {dimension_numbers = #tpu.dot_dimension_numbers<[1], [0], [0], [1], [0, 0, 1, 1], [], []>} : vector<8x32xf32>, vector<32x128xf32>, vector<8x128xf32> -> vector<8x128xf32>
    %37 = arith.addf %35, %36 : vector<8x128xf32>
    %38 = arith.negf %37 : vector<8x128xf32>
    %39 = math.exp %38 : vector<8x128xf32>
    %cst_17 = arith.constant 1.000000e+00 : f32
    %40 = vector.broadcast %cst_17 : f32 to vector<8x128xf32>
    %41 = arith.addf %40, %39 : vector<8x128xf32>
    %42 = arith.divf %40, %41 : vector<8x128xf32>
    %43 = math.tanh %37 : vector<8x128xf32>
    %44 = vector.extract_strided_slice %42 {offsets = [0, 32], sizes = [8, 32], strides = [1, 1]} : vector<8x128xf32> to vector<8x32xf32>
    %45 = arith.mulf %44, %26 : vector<8x32xf32>
    %46 = vector.extract_strided_slice %42 {offsets = [0, 0], sizes = [8, 32], strides = [1, 1]} : vector<8x128xf32> to vector<8x32xf32>
    %47 = vector.extract_strided_slice %43 {offsets = [0, 64], sizes = [8, 32], strides = [1, 1]} : vector<8x128xf32> to vector<8x32xf32>
    %48 = arith.mulf %46, %47 : vector<8x32xf32>
    %49 = arith.addf %45, %48 : vector<8x32xf32>
    %50 = vector.extract_strided_slice %42 {offsets = [0, 96], sizes = [8, 32], strides = [1, 1]} : vector<8x128xf32> to vector<8x32xf32>
    %51 = math.tanh %49 : vector<8x32xf32>
    %52 = arith.mulf %50, %51 : vector<8x32xf32>
    %53 = arith.index_cast %33 : i32 to index
    %c0_18 = arith.constant 0 : index
    %54 = vector.load %arg12[%53, %c0_18] : memref<64x32xf32, #tpu.memory_space<vmem>>, vector<8x32xf32>
    tpu.vector_store %arg12[%53, %c0_18], %52 {strides = array<i32>} : memref<64x32xf32, #tpu.memory_space<vmem>>, vector<8x32xf32>,
    %c2_i32 = arith.constant 2 : i32
    %c8_i32_19 = arith.constant 8 : i32
    %55 = arith.muli %c2_i32, %c8_i32_19 : i32
    %56 = tpu.assume_multiple %55, 8 : i32
    %57 = arith.index_cast %56 : i32 to index
    %c0_20 = arith.constant 0 : index
    %58 = vector.load %arg11[%57, %c0_20] : memref<64x128xf32, #tpu.memory_space<vmem>>, vector<8x128xf32>
    %cst_21 = arith.constant dense<0.000000e+00> : vector<8x128xf32>
    %59 = tpu.matmul %52, %7, %cst_21 {dimension_numbers = #tpu.dot_dimension_numbers<[1], [0], [0], [1], [0, 0, 1, 1], [], []>} : vector<8x32xf32>, vector<32x128xf32>, vector<8x128xf32> -> vector<8x128xf32>
    %60 = arith.addf %58, %59 : vector<8x128xf32>
    %61 = arith.negf %60 : vector<8x128xf32>
    %62 = math.exp %61 : vector<8x128xf32>
    %cst_22 = arith.constant 1.000000e+00 : f32
    %63 = vector.broadcast %cst_22 : f32 to vector<8x128xf32>
    %64 = arith.addf %63, %62 : vector<8x128xf32>
    %65 = arith.divf %63, %64 : vector<8x128xf32>
    %66 = math.tanh %60 : vector<8x128xf32>
    %67 = vector.extract_strided_slice %65 {offsets = [0, 32], sizes = [8, 32], strides = [1, 1]} : vector<8x128xf32> to vector<8x32xf32>
    %68 = arith.mulf %67, %49 : vector<8x32xf32>
    %69 = vector.extract_strided_slice %65 {offsets = [0, 0], sizes = [8, 32], strides = [1, 1]} : vector<8x128xf32> to vector<8x32xf32>
    %70 = vector.extract_strided_slice %66 {offsets = [0, 64], sizes = [8, 32], strides = [1, 1]} : vector<8x128xf32> to vector<8x32xf32>
    %71 = arith.mulf %69, %70 : vector<8x32xf32>
    %72 = arith.addf %68, %71 : vector<8x32xf32>
    %73 = vector.extract_strided_slice %65 {offsets = [0, 96], sizes = [8, 32], strides = [1, 1]} : vector<8x128xf32> to vector<8x32xf32>
    %74 = math.tanh %72 : vector<8x32xf32>
    %75 = arith.mulf %73, %74 : vector<8x32xf32>
    %76 = arith.index_cast %56 : i32 to index
    %c0_23 = arith.constant 0 : index
    %77 = vector.load %arg12[%76, %c0_23] : memref<64x32xf32, #tpu.memory_space<vmem>>, vector<8x32xf32>
    tpu.vector_store %arg12[%76, %c0_23], %75 {strides = array<i32>} : memref<64x32xf32, #tpu.memory_space<vmem>>, vector<8x32xf32>,
    %c3_i32 = arith.constant 3 : i32
    %c8_i32_24 = arith.constant 8 : i32
    %78 = arith.muli %c3_i32, %c8_i32_24 : i32
    %79 = tpu.assume_multiple %78, 8 : i32
    %80 = arith.index_cast %79 : i32 to index
    %c0_25 = arith.constant 0 : index
    %81 = vector.load %arg11[%80, %c0_25] : memref<64x128xf32, #tpu.memory_space<vmem>>, vector<8x128xf32>
    %cst_26 = arith.constant dense<0.000000e+00> : vector<8x128xf32>
    %82 = tpu.matmul %75, %7, %cst_26 {dimension_numbers = #tpu.dot_dimension_numbers<[1], [0], [0], [1], [0, 0, 1, 1], [], []>} : vector<8x32xf32>, vector<32x128xf32>, vector<8x128xf32> -> vector<8x128xf32>
    %83 = arith.addf %81, %82 : vector<8x128xf32>
    %84 = arith.negf %83 : vector<8x128xf32>
    %85 = math.exp %84 : vector<8x128xf32>
    %cst_27 = arith.constant 1.000000e+00 : f32
    %86 = vector.broadcast %cst_27 : f32 to vector<8x128xf32>
    %87 = arith.addf %86, %85 : vector<8x128xf32>
    %88 = arith.divf %86, %87 : vector<8x128xf32>
    %89 = math.tanh %83 : vector<8x128xf32>
    %90 = vector.extract_strided_slice %88 {offsets = [0, 32], sizes = [8, 32], strides = [1, 1]} : vector<8x128xf32> to vector<8x32xf32>
    %91 = arith.mulf %90, %72 : vector<8x32xf32>
    %92 = vector.extract_strided_slice %88 {offsets = [0, 0], sizes = [8, 32], strides = [1, 1]} : vector<8x128xf32> to vector<8x32xf32>
    %93 = vector.extract_strided_slice %89 {offsets = [0, 64], sizes = [8, 32], strides = [1, 1]} : vector<8x128xf32> to vector<8x32xf32>
    %94 = arith.mulf %92, %93 : vector<8x32xf32>
    %95 = arith.addf %91, %94 : vector<8x32xf32>
    %96 = vector.extract_strided_slice %88 {offsets = [0, 96], sizes = [8, 32], strides = [1, 1]} : vector<8x128xf32> to vector<8x32xf32>
    %97 = math.tanh %95 : vector<8x32xf32>
    %98 = arith.mulf %96, %97 : vector<8x32xf32>
    %99 = arith.index_cast %79 : i32 to index
    %c0_28 = arith.constant 0 : index
    %100 = vector.load %arg12[%99, %c0_28] : memref<64x32xf32, #tpu.memory_space<vmem>>, vector<8x32xf32>
    tpu.vector_store %arg12[%99, %c0_28], %98 {strides = array<i32>} : memref<64x32xf32, #tpu.memory_space<vmem>>, vector<8x32xf32>,
    %c4_i32 = arith.constant 4 : i32
    %c8_i32_29 = arith.constant 8 : i32
    %101 = arith.muli %c4_i32, %c8_i32_29 : i32
    %102 = tpu.assume_multiple %101, 8 : i32
    %103 = arith.index_cast %102 : i32 to index
    %c0_30 = arith.constant 0 : index
    %104 = vector.load %arg11[%103, %c0_30] : memref<64x128xf32, #tpu.memory_space<vmem>>, vector<8x128xf32>
    %cst_31 = arith.constant dense<0.000000e+00> : vector<8x128xf32>
    %105 = tpu.matmul %98, %7, %cst_31 {dimension_numbers = #tpu.dot_dimension_numbers<[1], [0], [0], [1], [0, 0, 1, 1], [], []>} : vector<8x32xf32>, vector<32x128xf32>, vector<8x128xf32> -> vector<8x128xf32>
    %106 = arith.addf %104, %105 : vector<8x128xf32>
    %107 = arith.negf %106 : vector<8x128xf32>
    %108 = math.exp %107 : vector<8x128xf32>
    %cst_32 = arith.constant 1.000000e+00 : f32
    %109 = vector.broadcast %cst_32 : f32 to vector<8x128xf32>
    %110 = arith.addf %109, %108 : vector<8x128xf32>
    %111 = arith.divf %109, %110 : vector<8x128xf32>
    %112 = math.tanh %106 : vector<8x128xf32>
    %113 = vector.extract_strided_slice %111 {offsets = [0, 32], sizes = [8, 32], strides = [1, 1]} : vector<8x128xf32> to vector<8x32xf32>
    %114 = arith.mulf %113, %95 : vector<8x32xf32>
    %115 = vector.extract_strided_slice %111 {offsets = [0, 0], sizes = [8, 32], strides = [1, 1]} : vector<8x128xf32> to vector<8x32xf32>
    %116 = vector.extract_strided_slice %112 {offsets = [0, 64], sizes = [8, 32], strides = [1, 1]} : vector<8x128xf32> to vector<8x32xf32>
    %117 = arith.mulf %115, %116 : vector<8x32xf32>
    %118 = arith.addf %114, %117 : vector<8x32xf32>
    %119 = vector.extract_strided_slice %111 {offsets = [0, 96], sizes = [8, 32], strides = [1, 1]} : vector<8x128xf32> to vector<8x32xf32>
    %120 = math.tanh %118 : vector<8x32xf32>
    %121 = arith.mulf %119, %120 : vector<8x32xf32>
    %122 = arith.index_cast %102 : i32 to index
    %c0_33 = arith.constant 0 : index
    %123 = vector.load %arg12[%122, %c0_33] : memref<64x32xf32, #tpu.memory_space<vmem>>, vector<8x32xf32>
    tpu.vector_store %arg12[%122, %c0_33], %121 {strides = array<i32>} : memref<64x32xf32, #tpu.memory_space<vmem>>, vector<8x32xf32>,
    %c5_i32 = arith.constant 5 : i32
    %c8_i32_34 = arith.constant 8 : i32
    %124 = arith.muli %c5_i32, %c8_i32_34 : i32
    %125 = tpu.assume_multiple %124, 8 : i32
    %126 = arith.index_cast %125 : i32 to index
    %c0_35 = arith.constant 0 : index
    %127 = vector.load %arg11[%126, %c0_35] : memref<64x128xf32, #tpu.memory_space<vmem>>, vector<8x128xf32>
    %cst_36 = arith.constant dense<0.000000e+00> : vector<8x128xf32>
    %128 = tpu.matmul %121, %7, %cst_36 {dimension_numbers = #tpu.dot_dimension_numbers<[1], [0], [0], [1], [0, 0, 1, 1], [], []>} : vector<8x32xf32>, vector<32x128xf32>, vector<8x128xf32> -> vector<8x128xf32>
    %129 = arith.addf %127, %128 : vector<8x128xf32>
    %130 = arith.negf %129 : vector<8x128xf32>
    %131 = math.exp %130 : vector<8x128xf32>
    %cst_37 = arith.constant 1.000000e+00 : f32
    %132 = vector.broadcast %cst_37 : f32 to vector<8x128xf32>
    %133 = arith.addf %132, %131 : vector<8x128xf32>
    %134 = arith.divf %132, %133 : vector<8x128xf32>
    %135 = math.tanh %129 : vector<8x128xf32>
    %136 = vector.extract_strided_slice %134 {offsets = [0, 32], sizes = [8, 32], strides = [1, 1]} : vector<8x128xf32> to vector<8x32xf32>
    %137 = arith.mulf %136, %118 : vector<8x32xf32>
    %138 = vector.extract_strided_slice %134 {offsets = [0, 0], sizes = [8, 32], strides = [1, 1]} : vector<8x128xf32> to vector<8x32xf32>
    %139 = vector.extract_strided_slice %135 {offsets = [0, 64], sizes = [8, 32], strides = [1, 1]} : vector<8x128xf32> to vector<8x32xf32>
    %140 = arith.mulf %138, %139 : vector<8x32xf32>
    %141 = arith.addf %137, %140 : vector<8x32xf32>
    %142 = vector.extract_strided_slice %134 {offsets = [0, 96], sizes = [8, 32], strides = [1, 1]} : vector<8x128xf32> to vector<8x32xf32>
    %143 = math.tanh %141 : vector<8x32xf32>
    %144 = arith.mulf %142, %143 : vector<8x32xf32>
    %145 = arith.index_cast %125 : i32 to index
    %c0_38 = arith.constant 0 : index
    %146 = vector.load %arg12[%145, %c0_38] : memref<64x32xf32, #tpu.memory_space<vmem>>, vector<8x32xf32>
    tpu.vector_store %arg12[%145, %c0_38], %144 {strides = array<i32>} : memref<64x32xf32, #tpu.memory_space<vmem>>, vector<8x32xf32>,
    %c6_i32 = arith.constant 6 : i32
    %c8_i32_39 = arith.constant 8 : i32
    %147 = arith.muli %c6_i32, %c8_i32_39 : i32
    %148 = tpu.assume_multiple %147, 8 : i32
    %149 = arith.index_cast %148 : i32 to index
    %c0_40 = arith.constant 0 : index
    %150 = vector.load %arg11[%149, %c0_40] : memref<64x128xf32, #tpu.memory_space<vmem>>, vector<8x128xf32>
    %cst_41 = arith.constant dense<0.000000e+00> : vector<8x128xf32>
    %151 = tpu.matmul %144, %7, %cst_41 {dimension_numbers = #tpu.dot_dimension_numbers<[1], [0], [0], [1], [0, 0, 1, 1], [], []>} : vector<8x32xf32>, vector<32x128xf32>, vector<8x128xf32> -> vector<8x128xf32>
    %152 = arith.addf %150, %151 : vector<8x128xf32>
    %153 = arith.negf %152 : vector<8x128xf32>
    %154 = math.exp %153 : vector<8x128xf32>
    %cst_42 = arith.constant 1.000000e+00 : f32
    %155 = vector.broadcast %cst_42 : f32 to vector<8x128xf32>
    %156 = arith.addf %155, %154 : vector<8x128xf32>
    %157 = arith.divf %155, %156 : vector<8x128xf32>
    %158 = math.tanh %152 : vector<8x128xf32>
    %159 = vector.extract_strided_slice %157 {offsets = [0, 32], sizes = [8, 32], strides = [1, 1]} : vector<8x128xf32> to vector<8x32xf32>
    %160 = arith.mulf %159, %141 : vector<8x32xf32>
    %161 = vector.extract_strided_slice %157 {offsets = [0, 0], sizes = [8, 32], strides = [1, 1]} : vector<8x128xf32> to vector<8x32xf32>
    %162 = vector.extract_strided_slice %158 {offsets = [0, 64], sizes = [8, 32], strides = [1, 1]} : vector<8x128xf32> to vector<8x32xf32>
    %163 = arith.mulf %161, %162 : vector<8x32xf32>
    %164 = arith.addf %160, %163 : vector<8x32xf32>
    %165 = vector.extract_strided_slice %157 {offsets = [0, 96], sizes = [8, 32], strides = [1, 1]} : vector<8x128xf32> to vector<8x32xf32>
    %166 = math.tanh %164 : vector<8x32xf32>
    %167 = arith.mulf %165, %166 : vector<8x32xf32>
    %168 = arith.index_cast %148 : i32 to index
    %c0_43 = arith.constant 0 : index
    %169 = vector.load %arg12[%168, %c0_43] : memref<64x32xf32, #tpu.memory_space<vmem>>, vector<8x32xf32>
    tpu.vector_store %arg12[%168, %c0_43], %167 {strides = array<i32>} : memref<64x32xf32, #tpu.memory_space<vmem>>, vector<8x32xf32>,
    %c7_i32 = arith.constant 7 : i32
    %c8_i32_44 = arith.constant 8 : i32
    %170 = arith.muli %c7_i32, %c8_i32_44 : i32
    %171 = tpu.assume_multiple %170, 8 : i32
    %172 = arith.index_cast %171 : i32 to index
    %c0_45 = arith.constant 0 : index
    %173 = vector.load %arg11[%172, %c0_45] : memref<64x128xf32, #tpu.memory_space<vmem>>, vector<8x128xf32>
    %cst_46 = arith.constant dense<0.000000e+00> : vector<8x128xf32>
    %174 = tpu.matmul %167, %7, %cst_46 {dimension_numbers = #tpu.dot_dimension_numbers<[1], [0], [0], [1], [0, 0, 1, 1], [], []>} : vector<8x32xf32>, vector<32x128xf32>, vector<8x128xf32> -> vector<8x128xf32>
    %175 = arith.addf %173, %174 : vector<8x128xf32>
    %176 = arith.negf %175 : vector<8x128xf32>
    %177 = math.exp %176 : vector<8x128xf32>
    %cst_47 = arith.constant 1.000000e+00 : f32
    %178 = vector.broadcast %cst_47 : f32 to vector<8x128xf32>
    %179 = arith.addf %178, %177 : vector<8x128xf32>
    %180 = arith.divf %178, %179 : vector<8x128xf32>
    %181 = math.tanh %175 : vector<8x128xf32>
    %182 = vector.extract_strided_slice %180 {offsets = [0, 32], sizes = [8, 32], strides = [1, 1]} : vector<8x128xf32> to vector<8x32xf32>
    %183 = arith.mulf %182, %164 : vector<8x32xf32>
    %184 = vector.extract_strided_slice %180 {offsets = [0, 0], sizes = [8, 32], strides = [1, 1]} : vector<8x128xf32> to vector<8x32xf32>
    %185 = vector.extract_strided_slice %181 {offsets = [0, 64], sizes = [8, 32], strides = [1, 1]} : vector<8x128xf32> to vector<8x32xf32>
    %186 = arith.mulf %184, %185 : vector<8x32xf32>
    %187 = arith.addf %183, %186 : vector<8x32xf32>
    %188 = vector.extract_strided_slice %180 {offsets = [0, 96], sizes = [8, 32], strides = [1, 1]} : vector<8x128xf32> to vector<8x32xf32>
    %189 = math.tanh %187 : vector<8x32xf32>
    %190 = arith.mulf %188, %189 : vector<8x32xf32>
    %191 = arith.index_cast %171 : i32 to index
    %c0_48 = arith.constant 0 : index
    %192 = vector.load %arg12[%191, %c0_48] : memref<64x32xf32, #tpu.memory_space<vmem>>, vector<8x32xf32>
    tpu.vector_store %arg12[%191, %c0_48], %190 {strides = array<i32>} : memref<64x32xf32, #tpu.memory_space<vmem>>, vector<8x32xf32>,
    %c8_i32_49 = arith.constant 8 : i32
    %c0_50 = arith.constant 0 : index
    %c0_51 = arith.constant 0 : index
    %193 = vector.load %arg12[%c0_50, %c0_51] : memref<64x32xf32, #tpu.memory_space<vmem>>, vector<64x32xf32>
    %194 = arith.truncf %193 : vector<64x32xf32> to vector<64x32xbf16>
    %c0_52 = arith.constant 0 : index
    %c0_53 = arith.constant 0 : index
    %195 = vector.load %arg5[%c0_52, %c0_53] : memref<32x128xbf16, #tpu.memory_space<vmem>>, vector<32x128xbf16>
    %cst_54 = arith.constant dense<0.000000e+00> : vector<64x128xf32>
    %196 = tpu.matmul %194, %195, %cst_54 {dimension_numbers = #tpu.dot_dimension_numbers<[1], [0], [0], [1], [0, 0, 1, 1], [], []>} : vector<64x32xbf16>, vector<32x128xbf16>, vector<64x128xf32> -> vector<64x128xf32>
    %c0_55 = arith.constant 0 : index
    %c0_56 = arith.constant 0 : index
    %197 = vector.load %arg7[%c0_55, %c0_56] : memref<1x128xf32, #tpu.memory_space<vmem>>, vector<1x128xf32>
    %198 = vector.broadcast %197 : vector<1x128xf32> to vector<64x128xf32>
    %199 = arith.addf %196, %198 : vector<64x128xf32>
    %c0_57 = arith.constant 0 : index
    %c0_58 = arith.constant 0 : index
    %200 = vector.load %arg11[%c0_57, %c0_58] : memref<64x128xf32, #tpu.memory_space<vmem>>, vector<64x128xf32>
    tpu.vector_store %arg11[%c0_57, %c0_58], %199 {strides = array<i32>} : memref<64x128xf32, #tpu.memory_space<vmem>>, vector<64x128xf32>,
    %c0_59 = arith.constant 0 : index
    %c0_60 = arith.constant 0 : index
    %201 = vector.load %arg6[%c0_59, %c0_60] : memref<32x128xf32, #tpu.memory_space<vmem>>, vector<32x128xf32>
    %cst_61 = arith.constant 0.000000e+00 : f32
    %202 = vector.broadcast %cst_61 : f32 to vector<8x32xf32>
    %c0_i32_62 = arith.constant 0 : i32
    %c8_i32_63 = arith.constant 8 : i32
    %203 = arith.muli %c0_i32_62, %c8_i32_63 : i32
    %204 = tpu.assume_multiple %203, 8 : i32
    %205 = arith.index_cast %204 : i32 to index
    %c0_64 = arith.constant 0 : index
    %206 = vector.load %arg11[%205, %c0_64] : memref<64x128xf32, #tpu.memory_space<vmem>>, vector<8x128xf32>
    %cst_65 = arith.constant dense<0.000000e+00> : vector<8x128xf32>
    %207 = tpu.matmul %202, %201, %cst_65 {dimension_numbers = #tpu.dot_dimension_numbers<[1], [0], [0], [1], [0, 0, 1, 1], [], []>} : vector<8x32xf32>, vector<32x128xf32>, vector<8x128xf32> -> vector<8x128xf32>
    %208 = arith.addf %206, %207 : vector<8x128xf32>
    %209 = arith.negf %208 : vector<8x128xf32>
    %210 = math.exp %209 : vector<8x128xf32>
    %cst_66 = arith.constant 1.000000e+00 : f32
    %211 = vector.broadcast %cst_66 : f32 to vector<8x128xf32>
    %212 = arith.addf %211, %210 : vector<8x128xf32>
    %213 = arith.divf %211, %212 : vector<8x128xf32>
    %214 = math.tanh %208 : vector<8x128xf32>
    %215 = vector.extract_strided_slice %213 {offsets = [0, 32], sizes = [8, 32], strides = [1, 1]} : vector<8x128xf32> to vector<8x32xf32>
    %216 = arith.mulf %215, %202 : vector<8x32xf32>
    %217 = vector.extract_strided_slice %213 {offsets = [0, 0], sizes = [8, 32], strides = [1, 1]} : vector<8x128xf32> to vector<8x32xf32>
    %218 = vector.extract_strided_slice %214 {offsets = [0, 64], sizes = [8, 32], strides = [1, 1]} : vector<8x128xf32> to vector<8x32xf32>
    %219 = arith.mulf %217, %218 : vector<8x32xf32>
    %220 = arith.addf %216, %219 : vector<8x32xf32>
    %221 = vector.extract_strided_slice %213 {offsets = [0, 96], sizes = [8, 32], strides = [1, 1]} : vector<8x128xf32> to vector<8x32xf32>
    %222 = math.tanh %220 : vector<8x32xf32>
    %223 = arith.mulf %221, %222 : vector<8x32xf32>
    %224 = arith.index_cast %204 : i32 to index
    %c0_67 = arith.constant 0 : index
    %225 = vector.load %arg13[%224, %c0_67] : memref<64x32xf32, #tpu.memory_space<vmem>>, vector<8x32xf32>
    tpu.vector_store %arg13[%224, %c0_67], %223 {strides = array<i32>} : memref<64x32xf32, #tpu.memory_space<vmem>>, vector<8x32xf32>,
    %c1_i32_68 = arith.constant 1 : i32
    %c8_i32_69 = arith.constant 8 : i32
    %226 = arith.muli %c1_i32_68, %c8_i32_69 : i32
    %227 = tpu.assume_multiple %226, 8 : i32
    %228 = arith.index_cast %227 : i32 to index
    %c0_70 = arith.constant 0 : index
    %229 = vector.load %arg11[%228, %c0_70] : memref<64x128xf32, #tpu.memory_space<vmem>>, vector<8x128xf32>
    %cst_71 = arith.constant dense<0.000000e+00> : vector<8x128xf32>
    %230 = tpu.matmul %223, %201, %cst_71 {dimension_numbers = #tpu.dot_dimension_numbers<[1], [0], [0], [1], [0, 0, 1, 1], [], []>} : vector<8x32xf32>, vector<32x128xf32>, vector<8x128xf32> -> vector<8x128xf32>
    %231 = arith.addf %229, %230 : vector<8x128xf32>
    %232 = arith.negf %231 : vector<8x128xf32>
    %233 = math.exp %232 : vector<8x128xf32>
    %cst_72 = arith.constant 1.000000e+00 : f32
    %234 = vector.broadcast %cst_72 : f32 to vector<8x128xf32>
    %235 = arith.addf %234, %233 : vector<8x128xf32>
    %236 = arith.divf %234, %235 : vector<8x128xf32>
    %237 = math.tanh %231 : vector<8x128xf32>
    %238 = vector.extract_strided_slice %236 {offsets = [0, 32], sizes = [8, 32], strides = [1, 1]} : vector<8x128xf32> to vector<8x32xf32>
    %239 = arith.mulf %238, %220 : vector<8x32xf32>
    %240 = vector.extract_strided_slice %236 {offsets = [0, 0], sizes = [8, 32], strides = [1, 1]} : vector<8x128xf32> to vector<8x32xf32>
    %241 = vector.extract_strided_slice %237 {offsets = [0, 64], sizes = [8, 32], strides = [1, 1]} : vector<8x128xf32> to vector<8x32xf32>
    %242 = arith.mulf %240, %241 : vector<8x32xf32>
    %243 = arith.addf %239, %242 : vector<8x32xf32>
    %244 = vector.extract_strided_slice %236 {offsets = [0, 96], sizes = [8, 32], strides = [1, 1]} : vector<8x128xf32> to vector<8x32xf32>
    %245 = math.tanh %243 : vector<8x32xf32>
    %246 = arith.mulf %244, %245 : vector<8x32xf32>
    %247 = arith.index_cast %227 : i32 to index
    %c0_73 = arith.constant 0 : index
    %248 = vector.load %arg13[%247, %c0_73] : memref<64x32xf32, #tpu.memory_space<vmem>>, vector<8x32xf32>
    tpu.vector_store %arg13[%247, %c0_73], %246 {strides = array<i32>} : memref<64x32xf32, #tpu.memory_space<vmem>>, vector<8x32xf32>,
    %c2_i32_74 = arith.constant 2 : i32
    %c8_i32_75 = arith.constant 8 : i32
    %249 = arith.muli %c2_i32_74, %c8_i32_75 : i32
    %250 = tpu.assume_multiple %249, 8 : i32
    %251 = arith.index_cast %250 : i32 to index
    %c0_76 = arith.constant 0 : index
    %252 = vector.load %arg11[%251, %c0_76] : memref<64x128xf32, #tpu.memory_space<vmem>>, vector<8x128xf32>
    %cst_77 = arith.constant dense<0.000000e+00> : vector<8x128xf32>
    %253 = tpu.matmul %246, %201, %cst_77 {dimension_numbers = #tpu.dot_dimension_numbers<[1], [0], [0], [1], [0, 0, 1, 1], [], []>} : vector<8x32xf32>, vector<32x128xf32>, vector<8x128xf32> -> vector<8x128xf32>
    %254 = arith.addf %252, %253 : vector<8x128xf32>
    %255 = arith.negf %254 : vector<8x128xf32>
    %256 = math.exp %255 : vector<8x128xf32>
    %cst_78 = arith.constant 1.000000e+00 : f32
    %257 = vector.broadcast %cst_78 : f32 to vector<8x128xf32>
    %258 = arith.addf %257, %256 : vector<8x128xf32>
    %259 = arith.divf %257, %258 : vector<8x128xf32>
    %260 = math.tanh %254 : vector<8x128xf32>
    %261 = vector.extract_strided_slice %259 {offsets = [0, 32], sizes = [8, 32], strides = [1, 1]} : vector<8x128xf32> to vector<8x32xf32>
    %262 = arith.mulf %261, %243 : vector<8x32xf32>
    %263 = vector.extract_strided_slice %259 {offsets = [0, 0], sizes = [8, 32], strides = [1, 1]} : vector<8x128xf32> to vector<8x32xf32>
    %264 = vector.extract_strided_slice %260 {offsets = [0, 64], sizes = [8, 32], strides = [1, 1]} : vector<8x128xf32> to vector<8x32xf32>
    %265 = arith.mulf %263, %264 : vector<8x32xf32>
    %266 = arith.addf %262, %265 : vector<8x32xf32>
    %267 = vector.extract_strided_slice %259 {offsets = [0, 96], sizes = [8, 32], strides = [1, 1]} : vector<8x128xf32> to vector<8x32xf32>
    %268 = math.tanh %266 : vector<8x32xf32>
    %269 = arith.mulf %267, %268 : vector<8x32xf32>
    %270 = arith.index_cast %250 : i32 to index
    %c0_79 = arith.constant 0 : index
    %271 = vector.load %arg13[%270, %c0_79] : memref<64x32xf32, #tpu.memory_space<vmem>>, vector<8x32xf32>
    tpu.vector_store %arg13[%270, %c0_79], %269 {strides = array<i32>} : memref<64x32xf32, #tpu.memory_space<vmem>>, vector<8x32xf32>,
    %c3_i32_80 = arith.constant 3 : i32
    %c8_i32_81 = arith.constant 8 : i32
    %272 = arith.muli %c3_i32_80, %c8_i32_81 : i32
    %273 = tpu.assume_multiple %272, 8 : i32
    %274 = arith.index_cast %273 : i32 to index
    %c0_82 = arith.constant 0 : index
    %275 = vector.load %arg11[%274, %c0_82] : memref<64x128xf32, #tpu.memory_space<vmem>>, vector<8x128xf32>
    %cst_83 = arith.constant dense<0.000000e+00> : vector<8x128xf32>
    %276 = tpu.matmul %269, %201, %cst_83 {dimension_numbers = #tpu.dot_dimension_numbers<[1], [0], [0], [1], [0, 0, 1, 1], [], []>} : vector<8x32xf32>, vector<32x128xf32>, vector<8x128xf32> -> vector<8x128xf32>
    %277 = arith.addf %275, %276 : vector<8x128xf32>
    %278 = arith.negf %277 : vector<8x128xf32>
    %279 = math.exp %278 : vector<8x128xf32>
    %cst_84 = arith.constant 1.000000e+00 : f32
    %280 = vector.broadcast %cst_84 : f32 to vector<8x128xf32>
    %281 = arith.addf %280, %279 : vector<8x128xf32>
    %282 = arith.divf %280, %281 : vector<8x128xf32>
    %283 = math.tanh %277 : vector<8x128xf32>
    %284 = vector.extract_strided_slice %282 {offsets = [0, 32], sizes = [8, 32], strides = [1, 1]} : vector<8x128xf32> to vector<8x32xf32>
    %285 = arith.mulf %284, %266 : vector<8x32xf32>
    %286 = vector.extract_strided_slice %282 {offsets = [0, 0], sizes = [8, 32], strides = [1, 1]} : vector<8x128xf32> to vector<8x32xf32>
    %287 = vector.extract_strided_slice %283 {offsets = [0, 64], sizes = [8, 32], strides = [1, 1]} : vector<8x128xf32> to vector<8x32xf32>
    %288 = arith.mulf %286, %287 : vector<8x32xf32>
    %289 = arith.addf %285, %288 : vector<8x32xf32>
    %290 = vector.extract_strided_slice %282 {offsets = [0, 96], sizes = [8, 32], strides = [1, 1]} : vector<8x128xf32> to vector<8x32xf32>
    %291 = math.tanh %289 : vector<8x32xf32>
    %292 = arith.mulf %290, %291 : vector<8x32xf32>
    %293 = arith.index_cast %273 : i32 to index
    %c0_85 = arith.constant 0 : index
    %294 = vector.load %arg13[%293, %c0_85] : memref<64x32xf32, #tpu.memory_space<vmem>>, vector<8x32xf32>
    tpu.vector_store %arg13[%293, %c0_85], %292 {strides = array<i32>} : memref<64x32xf32, #tpu.memory_space<vmem>>, vector<8x32xf32>,
    %c4_i32_86 = arith.constant 4 : i32
    %c8_i32_87 = arith.constant 8 : i32
    %295 = arith.muli %c4_i32_86, %c8_i32_87 : i32
    %296 = tpu.assume_multiple %295, 8 : i32
    %297 = arith.index_cast %296 : i32 to index
    %c0_88 = arith.constant 0 : index
    %298 = vector.load %arg11[%297, %c0_88] : memref<64x128xf32, #tpu.memory_space<vmem>>, vector<8x128xf32>
    %cst_89 = arith.constant dense<0.000000e+00> : vector<8x128xf32>
    %299 = tpu.matmul %292, %201, %cst_89 {dimension_numbers = #tpu.dot_dimension_numbers<[1], [0], [0], [1], [0, 0, 1, 1], [], []>} : vector<8x32xf32>, vector<32x128xf32>, vector<8x128xf32> -> vector<8x128xf32>
    %300 = arith.addf %298, %299 : vector<8x128xf32>
    %301 = arith.negf %300 : vector<8x128xf32>
    %302 = math.exp %301 : vector<8x128xf32>
    %cst_90 = arith.constant 1.000000e+00 : f32
    %303 = vector.broadcast %cst_90 : f32 to vector<8x128xf32>
    %304 = arith.addf %303, %302 : vector<8x128xf32>
    %305 = arith.divf %303, %304 : vector<8x128xf32>
    %306 = math.tanh %300 : vector<8x128xf32>
    %307 = vector.extract_strided_slice %305 {offsets = [0, 32], sizes = [8, 32], strides = [1, 1]} : vector<8x128xf32> to vector<8x32xf32>
    %308 = arith.mulf %307, %289 : vector<8x32xf32>
    %309 = vector.extract_strided_slice %305 {offsets = [0, 0], sizes = [8, 32], strides = [1, 1]} : vector<8x128xf32> to vector<8x32xf32>
    %310 = vector.extract_strided_slice %306 {offsets = [0, 64], sizes = [8, 32], strides = [1, 1]} : vector<8x128xf32> to vector<8x32xf32>
    %311 = arith.mulf %309, %310 : vector<8x32xf32>
    %312 = arith.addf %308, %311 : vector<8x32xf32>
    %313 = vector.extract_strided_slice %305 {offsets = [0, 96], sizes = [8, 32], strides = [1, 1]} : vector<8x128xf32> to vector<8x32xf32>
    %314 = math.tanh %312 : vector<8x32xf32>
    %315 = arith.mulf %313, %314 : vector<8x32xf32>
    %316 = arith.index_cast %296 : i32 to index
    %c0_91 = arith.constant 0 : index
    %317 = vector.load %arg13[%316, %c0_91] : memref<64x32xf32, #tpu.memory_space<vmem>>, vector<8x32xf32>
    tpu.vector_store %arg13[%316, %c0_91], %315 {strides = array<i32>} : memref<64x32xf32, #tpu.memory_space<vmem>>, vector<8x32xf32>,
    %c5_i32_92 = arith.constant 5 : i32
    %c8_i32_93 = arith.constant 8 : i32
    %318 = arith.muli %c5_i32_92, %c8_i32_93 : i32
    %319 = tpu.assume_multiple %318, 8 : i32
    %320 = arith.index_cast %319 : i32 to index
    %c0_94 = arith.constant 0 : index
    %321 = vector.load %arg11[%320, %c0_94] : memref<64x128xf32, #tpu.memory_space<vmem>>, vector<8x128xf32>
    %cst_95 = arith.constant dense<0.000000e+00> : vector<8x128xf32>
    %322 = tpu.matmul %315, %201, %cst_95 {dimension_numbers = #tpu.dot_dimension_numbers<[1], [0], [0], [1], [0, 0, 1, 1], [], []>} : vector<8x32xf32>, vector<32x128xf32>, vector<8x128xf32> -> vector<8x128xf32>
    %323 = arith.addf %321, %322 : vector<8x128xf32>
    %324 = arith.negf %323 : vector<8x128xf32>
    %325 = math.exp %324 : vector<8x128xf32>
    %cst_96 = arith.constant 1.000000e+00 : f32
    %326 = vector.broadcast %cst_96 : f32 to vector<8x128xf32>
    %327 = arith.addf %326, %325 : vector<8x128xf32>
    %328 = arith.divf %326, %327 : vector<8x128xf32>
    %329 = math.tanh %323 : vector<8x128xf32>
    %330 = vector.extract_strided_slice %328 {offsets = [0, 32], sizes = [8, 32], strides = [1, 1]} : vector<8x128xf32> to vector<8x32xf32>
    %331 = arith.mulf %330, %312 : vector<8x32xf32>
    %332 = vector.extract_strided_slice %328 {offsets = [0, 0], sizes = [8, 32], strides = [1, 1]} : vector<8x128xf32> to vector<8x32xf32>
    %333 = vector.extract_strided_slice %329 {offsets = [0, 64], sizes = [8, 32], strides = [1, 1]} : vector<8x128xf32> to vector<8x32xf32>
    %334 = arith.mulf %332, %333 : vector<8x32xf32>
    %335 = arith.addf %331, %334 : vector<8x32xf32>
    %336 = vector.extract_strided_slice %328 {offsets = [0, 96], sizes = [8, 32], strides = [1, 1]} : vector<8x128xf32> to vector<8x32xf32>
    %337 = math.tanh %335 : vector<8x32xf32>
    %338 = arith.mulf %336, %337 : vector<8x32xf32>
    %339 = arith.index_cast %319 : i32 to index
    %c0_97 = arith.constant 0 : index
    %340 = vector.load %arg13[%339, %c0_97] : memref<64x32xf32, #tpu.memory_space<vmem>>, vector<8x32xf32>
    tpu.vector_store %arg13[%339, %c0_97], %338 {strides = array<i32>} : memref<64x32xf32, #tpu.memory_space<vmem>>, vector<8x32xf32>,
    %c6_i32_98 = arith.constant 6 : i32
    %c8_i32_99 = arith.constant 8 : i32
    %341 = arith.muli %c6_i32_98, %c8_i32_99 : i32
    %342 = tpu.assume_multiple %341, 8 : i32
    %343 = arith.index_cast %342 : i32 to index
    %c0_100 = arith.constant 0 : index
    %344 = vector.load %arg11[%343, %c0_100] : memref<64x128xf32, #tpu.memory_space<vmem>>, vector<8x128xf32>
    %cst_101 = arith.constant dense<0.000000e+00> : vector<8x128xf32>
    %345 = tpu.matmul %338, %201, %cst_101 {dimension_numbers = #tpu.dot_dimension_numbers<[1], [0], [0], [1], [0, 0, 1, 1], [], []>} : vector<8x32xf32>, vector<32x128xf32>, vector<8x128xf32> -> vector<8x128xf32>
    %346 = arith.addf %344, %345 : vector<8x128xf32>
    %347 = arith.negf %346 : vector<8x128xf32>
    %348 = math.exp %347 : vector<8x128xf32>
    %cst_102 = arith.constant 1.000000e+00 : f32
    %349 = vector.broadcast %cst_102 : f32 to vector<8x128xf32>
    %350 = arith.addf %349, %348 : vector<8x128xf32>
    %351 = arith.divf %349, %350 : vector<8x128xf32>
    %352 = math.tanh %346 : vector<8x128xf32>
    %353 = vector.extract_strided_slice %351 {offsets = [0, 32], sizes = [8, 32], strides = [1, 1]} : vector<8x128xf32> to vector<8x32xf32>
    %354 = arith.mulf %353, %335 : vector<8x32xf32>
    %355 = vector.extract_strided_slice %351 {offsets = [0, 0], sizes = [8, 32], strides = [1, 1]} : vector<8x128xf32> to vector<8x32xf32>
    %356 = vector.extract_strided_slice %352 {offsets = [0, 64], sizes = [8, 32], strides = [1, 1]} : vector<8x128xf32> to vector<8x32xf32>
    %357 = arith.mulf %355, %356 : vector<8x32xf32>
    %358 = arith.addf %354, %357 : vector<8x32xf32>
    %359 = vector.extract_strided_slice %351 {offsets = [0, 96], sizes = [8, 32], strides = [1, 1]} : vector<8x128xf32> to vector<8x32xf32>
    %360 = math.tanh %358 : vector<8x32xf32>
    %361 = arith.mulf %359, %360 : vector<8x32xf32>
    %362 = arith.index_cast %342 : i32 to index
    %c0_103 = arith.constant 0 : index
    %363 = vector.load %arg13[%362, %c0_103] : memref<64x32xf32, #tpu.memory_space<vmem>>, vector<8x32xf32>
    tpu.vector_store %arg13[%362, %c0_103], %361 {strides = array<i32>} : memref<64x32xf32, #tpu.memory_space<vmem>>, vector<8x32xf32>,
    %c7_i32_104 = arith.constant 7 : i32
    %c8_i32_105 = arith.constant 8 : i32
    %364 = arith.muli %c7_i32_104, %c8_i32_105 : i32
    %365 = tpu.assume_multiple %364, 8 : i32
    %366 = arith.index_cast %365 : i32 to index
    %c0_106 = arith.constant 0 : index
    %367 = vector.load %arg11[%366, %c0_106] : memref<64x128xf32, #tpu.memory_space<vmem>>, vector<8x128xf32>
    %cst_107 = arith.constant dense<0.000000e+00> : vector<8x128xf32>
    %368 = tpu.matmul %361, %201, %cst_107 {dimension_numbers = #tpu.dot_dimension_numbers<[1], [0], [0], [1], [0, 0, 1, 1], [], []>} : vector<8x32xf32>, vector<32x128xf32>, vector<8x128xf32> -> vector<8x128xf32>
    %369 = arith.addf %367, %368 : vector<8x128xf32>
    %370 = arith.negf %369 : vector<8x128xf32>
    %371 = math.exp %370 : vector<8x128xf32>
    %cst_108 = arith.constant 1.000000e+00 : f32
    %372 = vector.broadcast %cst_108 : f32 to vector<8x128xf32>
    %373 = arith.addf %372, %371 : vector<8x128xf32>
    %374 = arith.divf %372, %373 : vector<8x128xf32>
    %375 = math.tanh %369 : vector<8x128xf32>
    %376 = vector.extract_strided_slice %374 {offsets = [0, 32], sizes = [8, 32], strides = [1, 1]} : vector<8x128xf32> to vector<8x32xf32>
    %377 = arith.mulf %376, %358 : vector<8x32xf32>
    %378 = vector.extract_strided_slice %374 {offsets = [0, 0], sizes = [8, 32], strides = [1, 1]} : vector<8x128xf32> to vector<8x32xf32>
    %379 = vector.extract_strided_slice %375 {offsets = [0, 64], sizes = [8, 32], strides = [1, 1]} : vector<8x128xf32> to vector<8x32xf32>
    %380 = arith.mulf %378, %379 : vector<8x32xf32>
    %381 = arith.addf %377, %380 : vector<8x32xf32>
    %382 = vector.extract_strided_slice %374 {offsets = [0, 96], sizes = [8, 32], strides = [1, 1]} : vector<8x128xf32> to vector<8x32xf32>
    %383 = math.tanh %381 : vector<8x32xf32>
    %384 = arith.mulf %382, %383 : vector<8x32xf32>
    %385 = arith.index_cast %365 : i32 to index
    %c0_109 = arith.constant 0 : index
    %386 = vector.load %arg13[%385, %c0_109] : memref<64x32xf32, #tpu.memory_space<vmem>>, vector<8x32xf32>
    tpu.vector_store %arg13[%385, %c0_109], %384 {strides = array<i32>} : memref<64x32xf32, #tpu.memory_space<vmem>>, vector<8x32xf32>,
    %c8_i32_110 = arith.constant 8 : i32
    %c0_111 = arith.constant 0 : index
    %c0_112 = arith.constant 0 : index
    %387 = vector.load %arg13[%c0_111, %c0_112] : memref<64x32xf32, #tpu.memory_space<vmem>>, vector<64x32xf32>
    %388 = arith.truncf %387 : vector<64x32xf32> to vector<64x32xbf16>
    %c0_113 = arith.constant 0 : index
    %c0_114 = arith.constant 0 : index
    %389 = vector.load %arg8[%c0_113, %c0_114] : memref<32x64xbf16, #tpu.memory_space<vmem>>, vector<32x64xbf16>
    %cst_115 = arith.constant dense<0.000000e+00> : vector<64x64xf32>
    %390 = tpu.matmul %388, %389, %cst_115 {dimension_numbers = #tpu.dot_dimension_numbers<[1], [0], [0], [1], [0, 0, 1, 1], [], []>} : vector<64x32xbf16>, vector<32x64xbf16>, vector<64x64xf32> -> vector<64x64xf32>
    %c0_116 = arith.constant 0 : index
    %c0_117 = arith.constant 0 : index
    %391 = vector.load %arg9[%c0_116, %c0_117] : memref<1x64xf32, #tpu.memory_space<vmem>>, vector<1x64xf32>
    %392 = vector.broadcast %391 : vector<1x64xf32> to vector<64x64xf32>
    %393 = arith.addf %390, %392 : vector<64x64xf32>
    %cst_118 = arith.constant dense<0xFF800000> : vector<64xf32>
    %394 = vector.multi_reduction <maximumf>, %393, %cst_118 [1] : vector<64x64xf32> to vector<64xf32>
    %395 = vector.shape_cast %394 : vector<64xf32> to vector<64x1xf32>
    %396 = vector.broadcast %395 : vector<64x1xf32> to vector<64x64xf32>
    %397 = arith.subf %393, %396 : vector<64x64xf32>
    %398 = math.exp %397 : vector<64x64xf32>
    %cst_119 = arith.constant dense<0.000000e+00> : vector<64xf32>
    %399 = vector.multi_reduction <add>, %398, %cst_119 [1] : vector<64x64xf32> to vector<64xf32>
    %400 = vector.shape_cast %399 : vector<64xf32> to vector<64x1xf32>
    %401 = math.log %400 : vector<64x1xf32>
    %402 = arith.addf %395, %401 : vector<64x1xf32>
    %403 = tpu.iota {dimensions = array<i32: 1>} : vector<64x64xi32>
    %c0_120 = arith.constant 0 : index
    %c0_121 = arith.constant 0 : index
    %404 = vector.load %arg1[%c0_120, %c0_121] : memref<64x1xi32, #tpu.memory_space<vmem>>, vector<64x1xi32>
    %405 = vector.broadcast %404 : vector<64x1xi32> to vector<64x64xi32>
    %406 = arith.cmpi eq, %403, %405 : vector<64x64xi32>
    %cst_122 = arith.constant 0.000000e+00 : f32
    %407 = vector.broadcast %cst_122 : f32 to vector<64x64xf32>
    %408 = arith.select %406, %393, %407 : vector<64x64xi1>, vector<64x64xf32>
    %cst_123 = arith.constant dense<0.000000e+00> : vector<64xf32>
    %409 = vector.multi_reduction <add>, %408, %cst_123 [1] : vector<64x64xf32> to vector<64xf32>
    %410 = vector.shape_cast %409 : vector<64xf32> to vector<64x1xf32>
    %411 = arith.subf %402, %410 : vector<64x1xf32>
    %412 = vector.shape_cast %411 : vector<64x1xf32> to vector<1x64x1xf32>
    %cst_124 = arith.constant dense<0.000000e+00> : vector<1xf32>
    %413 = vector.multi_reduction <add>, %412, %cst_124 [1, 2] : vector<1x64x1xf32> to vector<1xf32>
    %414 = vector.shape_cast %413 : vector<1xf32> to vector<1x1x1xf32>
    %415 = vector.extract %414[0, 0, 0] : f32 from vector<1x1x1xf32>
    %416 = vector.broadcast %415 : f32 to vector<1x1xf32>
    %c0_125 = arith.constant 0 : index
    %c0_126 = arith.constant 0 : index
    %417 = vector.load %arg10[%c0_125, %c0_126] : memref<1x1xf32, #tpu.memory_space<vmem>>, vector<1x1xf32>
    tpu.vector_store %arg10[%c0_125, %c0_126], %416 {strides = array<i32>} : memref<1x1xf32, #tpu.memory_space<vmem>>, vector<1x1xf32>,
    return
  }
}

</mosaic_0001>

<llo_original>
// kernel: tpu_custom_call.1
$region0: #{tpu_custom_call.1}
  #allocation0 [shape = 'u32[]', space=smem, size = 0x4, offset = 0x4, fixed_abs, tag = 'smem constant byte address 0x4 - core index']
  #allocation1 [shape = 'u32[144,128]{1,0:T(1,128)}', space=vmem, size = 0x12000, scoped, tag = 'internal scratch']
  #allocation2 [shape = 'f32[64,128]{1,0:T(8,128)}', space=vmem, size = 0x8000, scoped, tag = 'scratch operand']
  #allocation3 [shape = 'f32[64,32]{1,0:T(8,128)}', space=vmem, size = 0x8000, scoped, tag = 'scratch operand']
  #allocation4 [shape = 'f32[64,32]{1,0:T(8,128)}', space=vmem, size = 0x8000, scoped, tag = 'scratch operand']
  %s0 = inlined_call_operand.vmem [shape: bf16[64,32], index: 0, kind: input, shape index: {}]
  %s1 = inlined_call_operand.vmem [shape: s32[64,1], index: 1, kind: input, shape index: {}]
  %s2 = inlined_call_operand.vmem [shape: bf16[32,128], index: 2, kind: input, shape index: {}]
  %s3 = inlined_call_operand.vmem [shape: f32[32,128], index: 3, kind: input, shape index: {}]
  %s4 = inlined_call_operand.vmem [shape: f32[1,128], index: 4, kind: input, shape index: {}]
  %s5 = inlined_call_operand.vmem [shape: bf16[32,128], index: 5, kind: input, shape index: {}]
  %s6 = inlined_call_operand.vmem [shape: f32[32,128], index: 6, kind: input, shape index: {}]
  %s7 = inlined_call_operand.vmem [shape: f32[1,128], index: 7, kind: input, shape index: {}]
  %s8 = inlined_call_operand.vmem [shape: bf16[32,64], index: 8, kind: input, shape index: {}]
  %s9 = inlined_call_operand.vmem [shape: f32[1,64], index: 9, kind: input, shape index: {}]
  %s10 = inlined_call_operand.hbm [shape: f32[1,1], index: 10, kind: output, shape index: {}]
  %s11 = sld [smem:[#allocation0]]
  $region50: #{tpu_custom_call.1} parent=0
    _
  %s13 = ssub.s32 1, %s11
  %s14 = scalar_select 0, %s13, %s11
  $region1: #{tpu_custom_call.1} parent=0
    #allocation5 [shape = 'u8[512]{0}', space=vmem, size = 0x400, scoped, tag = 'output window, operand 0, single buffered']
    #allocation6 [shape = 's32[1]{0}', space=sflag, size = 0x4, scoped, tag = 'scoped memory for tpu_custom_call.1']
    %15 = vsyncpa [#allocation6], 0
    // Predicated region
    $region2: #{tpu_custom_call.1} parent=1 // pred_check
      _
    $region3: #{tpu_custom_call.1} parent=1 // pred_check_branch
      %17 = sbr.rel (0) target = $region5
    $region4: #{tpu_custom_call.1} parent=1 // pred_region
      _
    $region5: #{tpu_custom_call.1} parent=1 // pred_fallthru
      _
    // Predicated region
    $region6: #{tpu_custom_call.1} parent=1 // pred_check
      _
    $region7: #{tpu_custom_call.1} parent=1 // pred_check_branch
      %19 = sbr.rel (0) target = $region9
    $region8: #{tpu_custom_call.1} parent=1 // pred_region
      _
    $region9: #{tpu_custom_call.1} parent=1 // pred_fallthru
      _
    // Predicated region
    $region10: #{tpu_custom_call.1} parent=1 // pred_check
      _
    $region11: #{tpu_custom_call.1} parent=1 // pred_check_branch
      %21 = sbr.rel (0) target = $region13
    $region12: #{tpu_custom_call.1} parent=1 // pred_region
      _
    $region13: #{tpu_custom_call.1} parent=1 // pred_fallthru
      _
    // Predicated region
    $region14: #{tpu_custom_call.1} parent=1 // pred_check
      _
    $region15: #{tpu_custom_call.1} parent=1 // pred_check_branch
      %23 = sbr.rel (0) target = $region17
    $region16: #{tpu_custom_call.1} parent=1 // pred_region
      _
    $region17: #{tpu_custom_call.1} parent=1 // pred_fallthru
      _
    // Predicated region
    $region18: #{tpu_custom_call.1} parent=1 // pred_check
      _
    $region19: #{tpu_custom_call.1} parent=1 // pred_check_branch
      %25 = sbr.rel (0) target = $region21
    $region20: #{tpu_custom_call.1} parent=1 // pred_region
      _
    $region21: #{tpu_custom_call.1} parent=1 // pred_fallthru
      _
    // Predicated region
    $region22: #{tpu_custom_call.1} parent=1 // pred_check
      _
    $region23: #{tpu_custom_call.1} parent=1 // pred_check_branch
      %27 = sbr.rel (0) target = $region25
    $region24: #{tpu_custom_call.1} parent=1 // pred_region
      _
    $region25: #{tpu_custom_call.1} parent=1 // pred_fallthru
      _
    // Predicated region
    $region26: #{tpu_custom_call.1} parent=1 // pred_check
      _
    $region27: #{tpu_custom_call.1} parent=1 // pred_check_branch
      %29 = sbr.rel (0) target = $region29
    $region28: #{tpu_custom_call.1} parent=1 // pred_region
      _
    $region29: #{tpu_custom_call.1} parent=1 // pred_fallthru
      _
    // Predicated region
    $region30: #{tpu_custom_call.1} parent=1 // pred_check
      _
    $region31: #{tpu_custom_call.1} parent=1 // pred_check_branch
      %31 = sbr.rel (0) target = $region33
    $region32: #{tpu_custom_call.1} parent=1 // pred_region
      _
    $region33: #{tpu_custom_call.1} parent=1 // pred_fallthru
      _
    // Predicated region
    $region34: #{tpu_custom_call.1} parent=1 // pred_check
      _
    $region35: #{tpu_custom_call.1} parent=1 // pred_check_branch
      %33 = sbr.rel (0) target = $region37
    $region36: #{tpu_custom_call.1} parent=1 // pred_region
      _
    $region37: #{tpu_custom_call.1} parent=1 // pred_fallthru
      _
    // Predicated region
    $region38: #{tpu_custom_call.1} parent=1 // pred_check
      _
    $region39: #{tpu_custom_call.1} parent=1 // pred_check_branch
      %35 = sbr.rel (0) target = $region41
    $region40: #{tpu_custom_call.1} parent=1 // pred_region
      _
    $region41: #{tpu_custom_call.1} parent=1 // pred_fallthru
      _
    %v37 = vld [vmem:[%s0] sm:$0xf]
    %v38 = vld [vmem:[%s0 + $0x4] sm:$0xf]
    %v39 = vld [vmem:[%s0 + $0x8] sm:$0xf]
    %v40 = vld [vmem:[%s0 + $0xc] sm:$0xf]
    %v41 = vld [vmem:[%s0 + $0x10] sm:$0xf]
    %v42 = vld [vmem:[%s0 + $0x14] sm:$0xf]
    %v43 = vld [vmem:[%s0 + $0x18] sm:$0xf]
    %v44 = vld [vmem:[%s0 + $0x1c] sm:$0xf]
    %v45 = vld [vmem:[%s2] sm:$0xf]
    %v46 = vld [vmem:[%s2 + $0x4] sm:$0xf]
    %v47 = vld [vmem:[%s2 + $0x8] sm:$0xf]
    %v48 = vld [vmem:[%s2 + $0xc] sm:$0xf]
    %v49 = vld [vmem:[%s4] sm:$0x1]
    %v51 = vlaneseq
    %v52 = vshrl.u32 %v51, 7
    %v53 = vsub.s32 0, %v52
    %v54 = vrot.slane %v49, %v53
    %v64 = vunpack.c.l.b16 %v37
    %v65 = vunpack.c.l.b16 %v38
    %v66 = vunpack.c.l.b16 %v39
    %v67 = vunpack.c.l.b16 %v40
    %v68 = vunpack.c.l.b16 %v41
    %v69 = vunpack.c.l.b16 %v42
    %v70 = vunpack.c.l.b16 %v43
    %v71 = vunpack.c.l.b16 %v44
    %v72 = vpack.c.b16 %v65, %v64
    %v73 = vpack.c.b16 %v67, %v66
    %v74 = vpack.c.b16 %v69, %v68
    %v75 = vpack.c.b16 %v71, %v70
    %v80 = vunpack.c.l.b16 %v45
    %v81 = vunpack.c.l.b16 %v46
    %v82 = vunpack.c.l.b16 %v47
    %v83 = vunpack.c.l.b16 %v48
    %v84 = vpack.c.b16 %v81, %v80
    %v85 = vpack.c.b16 %v83, %v82
    %vm88 = vcmask 261120
    %v90 = vsel %vm88, %v72, 0
    %v93 = vsel %vm88, %v73, 0
    %v96 = vsel %vm88, %v74, 0
    %v99 = vsel %vm88, %v75, 0
    %101 = vmatprep.subr.bf16.mxu0 0
    %102 = vmatpush1.bf16.msra.mxu0 %v84
    %103 = vmatprep.subr.bf16.mxu0 0
    %104 = vmatpush1.bf16.msra.mxu0 %v85
    %105 = vmatprep.subr.bf16.mxu0 0
    %106 = vmatpush1.bf16.msra.mxu0 0
    %107 = vmatprep.subr.bf16.mxu0 0
    %108 = vmatpush1.bf16.msra.mxu0 0
    %109 = vmatprep.subr.bf16.mxu0 0
    %110 = vmatpush1.bf16.msra.mxu0 0
    %111 = vmatprep.subr.bf16.mxu0 0
    %112 = vmatpush1.bf16.msra.mxu0 0
    %113 = vmatprep.subr.bf16.mxu0 0
    %114 = vmatpush1.bf16.msra.mxu0 0
    %115 = vmatprep.subr.bf16.mxu0 0
    %116 = vmatpush1.bf16.msra.mxu0 0
    %117 = vmatprep.subr.bf16.mxu0 0
    %118 = vmatpush1.bf16.msra.mxu0 0
    %119 = vmatprep.subr.bf16.mxu0 0
    %120 = vmatpush1.bf16.msra.mxu0 0
    %121 = vmatprep.subr.bf16.mxu0 0
    %122 = vmatpush1.bf16.msra.mxu0 0
    %123 = vmatprep.subr.bf16.mxu0 0
    %124 = vmatpush1.bf16.msra.mxu0 0
    %125 = vmatprep.subr.bf16.mxu0 0
    %126 = vmatpush1.bf16.msra.mxu0 0
    %127 = vmatprep.subr.bf16.mxu0 0
    %128 = vmatpush1.bf16.msra.mxu0 0
    %129 = vmatprep.subr.bf16.mxu0 0
    %130 = vmatpush1.bf16.msra.mxu0 0
    %131 = vmatprep.subr.bf16.mxu0 0
    %132 = vmatpush1.bf16.msra.mxu0 0
    %133 = vmatprep.mubr.bf16.mxu0 0
    %134 = vmatmul.mubr.bf16.gmra.mrb[0].mxu0 %v90
    %v135 = vpop.f32.mrb[0].mxu0
    %v136 = vadd.f32 %v54, %v135
    %v137 = vpop.f32.mrb[0].mxu0
    %v138 = vpop.f32.mrb[0].mxu0
    %v139 = vadd.f32 %v54, %v138
    %v140 = vpop.f32.mrb[0].mxu0
    %141 = vmatprep.mubr.bf16.mxu0 0
    %142 = vmatmul.mubr.bf16.gmra.mrb[0].mxu0 %v93
    %v143 = vpop.f32.mrb[0].mxu0
    %v144 = vadd.f32 %v54, %v143
    %v145 = vpop.f32.mrb[0].mxu0
    %v146 = vpop.f32.mrb[0].mxu0
    %v147 = vadd.f32 %v54, %v146
    %v148 = vpop.f32.mrb[0].mxu0
    %149 = vmatprep.mubr.bf16.mxu0 0
    %150 = vmatmul.mubr.bf16.gmra.mrb[0].mxu0 %v96
    %v151 = vpop.f32.mrb[0].mxu0
    %v152 = vadd.f32 %v54, %v151
    %v153 = vpop.f32.mrb[0].mxu0
    %v154 = vpop.f32.mrb[0].mxu0
    %v155 = vadd.f32 %v54, %v154
    %v156 = vpop.f32.mrb[0].mxu0
    %157 = vmatprep.mubr.bf16.mxu0 0
    %158 = vmatmul.mubr.bf16.gmra.mrb[0].mxu0 %v99
    %v159 = vpop.f32.mrb[0].mxu0
    %v160 = vadd.f32 %v54, %v159
    %v161 = vpop.f32.mrb[0].mxu0
    %v162 = vpop.f32.mrb[0].mxu0
    %v163 = vadd.f32 %v54, %v162
    %v164 = vpop.f32.mrb[0].mxu0
    %165 = vdwg.mxu0
    %166 = vst [vmem:[#allocation2] sm:$0xff] %v136
    %167 = vst [vmem:[#allocation2 + $0x8] sm:$0xff] %v139
    %168 = vst [vmem:[#allocation2 + $0x10] sm:$0xff] %v144
    %169 = vst [vmem:[#allocation2 + $0x18] sm:$0xff] %v147
    %170 = vst [vmem:[#allocation2 + $0x20] sm:$0xff] %v152
    %171 = vst [vmem:[#allocation2 + $0x28] sm:$0xff] %v155
    %172 = vst [vmem:[#allocation2 + $0x30] sm:$0xff] %v160
    %173 = vst [vmem:[#allocation2 + $0x38] sm:$0xff] %v163
    %v174 = vld [vmem:[%s3] sm:$0xff]
    %v175 = vld [vmem:[%s3 + $0x8] sm:$0xff]
    %v176 = vld [vmem:[%s3 + $0x10] sm:$0xff]
    %v177 = vld [vmem:[%s3 + $0x18] sm:$0xff]
    %v178 = vld [vmem:[#allocation2] sm:$0xff]
    %v180 = vsel %vm88, 0.0, 0
    %182 = vmatprep.subr.mxu0 0.0
    %183 = vmatpush1.msra.mxu0 %v174
    %184 = vmatprep.subr.mxu0 0.0
    %185 = vmatpush1.msra.mxu0 %v175
    %186 = vmatprep.subr.mxu0 0.0
    %187 = vmatpush1.msra.mxu0 %v176
    %188 = vmatprep.subr.mxu0 0.0
    %189 = vmatpush1.msra.mxu0 %v177
    %190 = vmatprep.subr.mxu0 0.0
    %191 = vmatpush1.msra.mxu0 0.0
    %192 = vmatprep.subr.mxu0 0.0
    %193 = vmatpush1.msra.mxu0 0.0
    %194 = vmatprep.subr.mxu0 0.0
    %195 = vmatpush1.msra.mxu0 0.0
    %196 = vmatprep.subr.mxu0 0.0
    %197 = vmatpush1.msra.mxu0 0.0
    %198 = vmatprep.subr.mxu0 0.0
    %199 = vmatpush1.msra.mxu0 0.0
    %200 = vmatprep.subr.mxu0 0.0
    %201 = vmatpush1.msra.mxu0 0.0
    %202 = vmatprep.subr.mxu0 0.0
    %203 = vmatpush1.msra.mxu0 0.0
    %204 = vmatprep.subr.mxu0 0.0
    %205 = vmatpush1.msra.mxu0 0.0
    %206 = vmatprep.subr.mxu0 0.0
    %207 = vmatpush1.msra.mxu0 0.0
    %208 = vmatprep.subr.mxu0 0.0
    %209 = vmatpush1.msra.mxu0 0.0
    %210 = vmatprep.subr.mxu0 0.0
    %211 = vmatpush1.msra.mxu0 0.0
    %212 = vmatprep.subr.mxu0 0.0
    %213 = vmatpush1.msra.mxu0 0.0
    %214 = vmatprep.subr.mxu0 0.0
    %215 = vmatpush1.msra.mxu0 0.0
    %216 = vmatprep.subr.mxu0 0.0
    %217 = vmatpush1.msra.mxu0 0.0
    %218 = vmatprep.subr.mxu0 0.0
    %219 = vmatpush1.msra.mxu0 0.0
    %220 = vmatprep.subr.mxu0 0.0
    %221 = vmatpush1.msra.mxu0 0.0
    %222 = vmatprep.subr.mxu0 0.0
    %223 = vmatpush1.msra.mxu0 0.0
    %224 = vmatprep.subr.mxu0 0.0
    %225 = vmatpush1.msra.mxu0 0.0
    %226 = vmatprep.subr.mxu0 0.0
    %227 = vmatpush1.msra.mxu0 0.0
    %228 = vmatprep.subr.mxu0 0.0
    %229 = vmatpush1.msra.mxu0 0.0
    %230 = vmatprep.subr.mxu0 0.0
    %231 = vmatpush1.msra.mxu0 0.0
    %232 = vmatprep.subr.mxu0 0.0
    %233 = vmatpush1.msra.mxu0 0.0
    %234 = vmatprep.subr.mxu0 0.0
    %235 = vmatpush1.msra.mxu0 0.0
    %236 = vmatprep.subr.mxu0 0.0
    %237 = vmatpush1.msra.mxu0 0.0
    %238 = vmatprep.subr.mxu0 0.0
    %239 = vmatpush1.msra.mxu0 0.0
    %240 = vmatprep.subr.mxu0 0.0
    %241 = vmatpush1.msra.mxu0 0.0
    %242 = vmatprep.subr.mxu0 0.0
    %243 = vmatpush1.msra.mxu0 0.0
    %244 = vmatprep.subr.mxu0 0.0
    %245 = vmatpush1.msra.mxu0 0.0
    %246 = vmatprep.mubr.f32.mxu0 0.0
    %247 = vmatmul.mubr.f32.gmra.mrb[0].mxu0 %v180
    %v248 = vpop.f32.mrb[0].mxu0
    %v249 = vadd.f32 0.0, %v248
    %v250 = vpop.f32.mrb[0].mxu0
    %251 = vdwg.mxu0
    %v252 = vadd.f32 %v178, %v249
    %v253 = vxor.u32 %v252, 2147483648
    %v254 = vmul.f32 %v253, 1.442695
    %v255 = vpow.pop %v254
    %v256 = vadd.f32 %v255, 1.0
    %v257 = vrcp.pop %v256
    %v258 = vmul.f32 1.0, %v257
    %v259 = vtanh.pop %v252
    %v260 = vmul.f32 %v258, 0.0
    %262 = vrot.lane.b32.xlu0 %v259, 64
    %v263 = vpop.permute.xlu0 %262
    %v265 = vmul.f32 %v258, %v263
    %267 = vrot.lane.b32.xlu0 %v265, 32
    %v268 = vpop.permute.xlu0 %267
    %v270 = vadd.f32 %v260, %v268
    %v271 = vtanh.pop %v270
    %273 = vrot.lane.b32.xlu0 %v271, 64
    %v274 = vpop.permute.xlu0 %273
    %v276 = vmul.f32 %v258, %v274
    %278 = vrot.lane.b32.xlu0 %v276, 32
    %v279 = vpop.permute.xlu0 %278
    %281 = vst.msk [vmem:[#allocation3] sm:$0xff] %vm88, %v279
    %s282 = scalar_lea.vmem [#allocation2], 8
    %v283 = vld [vmem:[%s282] sm:$0xff]
    %v284 = vsel %vm88, %v279, 0
    %286 = vmatprep.subr.mxu0 0.0
    %287 = vmatpush1.msra.mxu0 %v174
    %288 = vmatprep.subr.mxu0 0.0
    %289 = vmatpush1.msra.mxu0 %v175
    %290 = vmatprep.subr.mxu0 0.0
    %291 = vmatpush1.msra.mxu0 %v176
    %292 = vmatprep.subr.mxu0 0.0
    %293 = vmatpush1.msra.mxu0 %v177
    %294 = vmatprep.subr.mxu0 0.0
    %295 = vmatpush1.msra.mxu0 0.0
    %296 = vmatprep.subr.mxu0 0.0
    %297 = vmatpush1.msra.mxu0 0.0
    %298 = vmatprep.subr.mxu0 0.0
    %299 = vmatpush1.msra.mxu0 0.0
    %300 = vmatprep.subr.mxu0 0.0
    %301 = vmatpush1.msra.mxu0 0.0
    %302 = vmatprep.subr.mxu0 0.0
    %303 = vmatpush1.msra.mxu0 0.0
    %304 = vmatprep.subr.mxu0 0.0
    %305 = vmatpush1.msra.mxu0 0.0
    %306 = vmatprep.subr.mxu0 0.0
    %307 = vmatpush1.msra.mxu0 0.0
    %308 = vmatprep.subr.mxu0 0.0
    %309 = vmatpush1.msra.mxu0 0.0
    %310 = vmatprep.subr.mxu0 0.0
    %311 = vmatpush1.msra.mxu0 0.0
    %312 = vmatprep.subr.mxu0 0.0
    %313 = vmatpush1.msra.mxu0 0.0
    %314 = vmatprep.subr.mxu0 0.0
    %315 = vmatpush1.msra.mxu0 0.0
    %316 = vmatprep.subr.mxu0 0.0
    %317 = vmatpush1.msra.mxu0 0.0
    %318 = vmatprep.subr.mxu0 0.0
    %319 = vmatpush1.msra.mxu0 0.0
    %320 = vmatprep.subr.mxu0 0.0
    %321 = vmatpush1.msra.mxu0 0.0
    %322 = vmatprep.subr.mxu0 0.0
    %323 = vmatpush1.msra.mxu0 0.0
    %324 = vmatprep.subr.mxu0 0.0
    %325 = vmatpush1.msra.mxu0 0.0
    %326 = vmatprep.subr.mxu0 0.0
    %327 = vmatpush1.msra.mxu0 0.0
    %328 = vmatprep.subr.mxu0 0.0
    %329 = vmatpush1.msra.mxu0 0.0
    %330 = vmatprep.subr.mxu0 0.0
    %331 = vmatpush1.msra.mxu0 0.0
    %332 = vmatprep.subr.mxu0 0.0
    %333 = vmatpush1.msra.mxu0 0.0
    %334 = vmatprep.subr.mxu0 0.0
    %335 = vmatpush1.msra.mxu0 0.0
    %336 = vmatprep.subr.mxu0 0.0
    %337 = vmatpush1.msra.mxu0 0.0
    %338 = vmatprep.subr.mxu0 0.0
    %339 = vmatpush1.msra.mxu0 0.0
    %340 = vmatprep.subr.mxu0 0.0
    %341 = vmatpush1.msra.mxu0 0.0
    %342 = vmatprep.subr.mxu0 0.0
    %343 = vmatpush1.msra.mxu0 0.0
    %344 = vmatprep.subr.mxu0 0.0
    %345 = vmatpush1.msra.mxu0 0.0
    %346 = vmatprep.subr.mxu0 0.0
    %347 = vmatpush1.msra.mxu0 0.0
    %348 = vmatprep.subr.mxu0 0.0
    %349 = vmatpush1.msra.mxu0 0.0
    %350 = vmatprep.mubr.f32.mxu0 0.0
    %351 = vmatmul.mubr.f32.gmra.mrb[0].mxu0 %v284
    %v352 = vpop.f32.mrb[0].mxu0
    %v353 = vadd.f32 0.0, %v352
    %v354 = vpop.f32.mrb[0].mxu0
    %355 = vdwg.mxu0
    %v356 = vadd.f32 %v283, %v353
    %v357 = vxor.u32 %v356, 2147483648
    %v358 = vmul.f32 %v357, 1.442695
    %v359 = vpow.pop %v358
    %v360 = vadd.f32 %v359, 1.0
    %v361 = vrcp.pop %v360
    %v362 = vmul.f32 1.0, %v361
    %v363 = vtanh.pop %v356
    %v364 = vmul.f32 %v362, %v270
    %366 = vrot.lane.b32.xlu0 %v363, 64
    %v367 = vpop.permute.xlu0 %366
    %v369 = vmul.f32 %v362, %v367
    %371 = vrot.lane.b32.xlu0 %v369, 32
    %v372 = vpop.permute.xlu0 %371
    %v374 = vadd.f32 %v364, %v372
    %v375 = vtanh.pop %v374
    %377 = vrot.lane.b32.xlu0 %v375, 64
    %v378 = vpop.permute.xlu0 %377
    %v380 = vmul.f32 %v362, %v378
    %382 = vrot.lane.b32.xlu0 %v380, 32
    %v383 = vpop.permute.xlu0 %382
    %s385 = scalar_lea.vmem [#allocation3], 8
    %386 = vst.msk [vmem:[%s385] sm:$0xff] %vm88, %v383
    %s387 = scalar_lea.vmem [#allocation2], 16
    %v388 = vld [vmem:[%s387] sm:$0xff]
    %v389 = vsel %vm88, %v383, 0
    %391 = vmatprep.subr.mxu0 0.0
    %392 = vmatpush1.msra.mxu0 %v174
    %393 = vmatprep.subr.mxu0 0.0
    %394 = vmatpush1.msra.mxu0 %v175
    %395 = vmatprep.subr.mxu0 0.0
    %396 = vmatpush1.msra.mxu0 %v176
    %397 = vmatprep.subr.mxu0 0.0
    %398 = vmatpush1.msra.mxu0 %v177
    %399 = vmatprep.subr.mxu0 0.0
    %400 = vmatpush1.msra.mxu0 0.0
    %401 = vmatprep.subr.mxu0 0.0
    %402 = vmatpush1.msra.mxu0 0.0
    %403 = vmatprep.subr.mxu0 0.0
    %404 = vmatpush1.msra.mxu0 0.0
    %405 = vmatprep.subr.mxu0 0.0
    %406 = vmatpush1.msra.mxu0 0.0
    %407 = vmatprep.subr.mxu0 0.0
    %408 = vmatpush1.msra.mxu0 0.0
    %409 = vmatprep.subr.mxu0 0.0
    %410 = vmatpush1.msra.mxu0 0.0
    %411 = vmatprep.subr.mxu0 0.0
    %412 = vmatpush1.msra.mxu0 0.0
    %413 = vmatprep.subr.mxu0 0.0
    %414 = vmatpush1.msra.mxu0 0.0
    %415 = vmatprep.subr.mxu0 0.0
    %416 = vmatpush1.msra.mxu0 0.0
    %417 = vmatprep.subr.mxu0 0.0
    %418 = vmatpush1.msra.mxu0 0.0
    %419 = vmatprep.subr.mxu0 0.0
    %420 = vmatpush1.msra.mxu0 0.0
    %421 = vmatprep.subr.mxu0 0.0
    %422 = vmatpush1.msra.mxu0 0.0
    %423 = vmatprep.subr.mxu0 0.0
    %424 = vmatpush1.msra.mxu0 0.0
    %425 = vmatprep.subr.mxu0 0.0
    %426 = vmatpush1.msra.mxu0 0.0
    %427 = vmatprep.subr.mxu0 0.0
    %428 = vmatpush1.msra.mxu0 0.0
    %429 = vmatprep.subr.mxu0 0.0
    %430 = vmatpush1.msra.mxu0 0.0
    %431 = vmatprep.subr.mxu0 0.0
    %432 = vmatpush1.msra.mxu0 0.0
    %433 = vmatprep.subr.mxu0 0.0
    %434 = vmatpush1.msra.mxu0 0.0
    %435 = vmatprep.subr.mxu0 0.0
    %436 = vmatpush1.msra.mxu0 0.0
    %437 = vmatprep.subr.mxu0 0.0
    %438 = vmatpush1.msra.mxu0 0.0
    %439 = vmatprep.subr.mxu0 0.0
    %440 = vmatpush1.msra.mxu0 0.0
    %441 = vmatprep.subr.mxu0 0.0
    %442 = vmatpush1.msra.mxu0 0.0
    %443 = vmatprep.subr.mxu0 0.0
    %444 = vmatpush1.msra.mxu0 0.0
    %445 = vmatprep.subr.mxu0 0.0
    %446 = vmatpush1.msra.mxu0 0.0
    %447 = vmatprep.subr.mxu0 0.0
    %448 = vmatpush1.msra.mxu0 0.0
    %449 = vmatprep.subr.mxu0 0.0
    %450 = vmatpush1.msra.mxu0 0.0
    %451 = vmatprep.subr.mxu0 0.0
    %452 = vmatpush1.msra.mxu0 0.0
    %453 = vmatprep.subr.mxu0 0.0
    %454 = vmatpush1.msra.mxu0 0.0
    %455 = vmatprep.mubr.f32.mxu0 0.0
    %456 = vmatmul.mubr.f32.gmra.mrb[0].mxu0 %v389
    %v457 = vpop.f32.mrb[0].mxu0
    %v458 = vadd.f32 0.0, %v457
    %v459 = vpop.f32.mrb[0].mxu0
    %460 = vdwg.mxu0
    %v461 = vadd.f32 %v388, %v458
    %v462 = vxor.u32 %v461, 2147483648
    %v463 = vmul.f32 %v462, 1.442695
    %v464 = vpow.pop %v463
    %v465 = vadd.f32 %v464, 1.0
    %v466 = vrcp.pop %v465
    %v467 = vmul.f32 1.0, %v466
    %v468 = vtanh.pop %v461
    %v469 = vmul.f32 %v467, %v374
    %471 = vrot.lane.b32.xlu0 %v468, 64
    %v472 = vpop.permute.xlu0 %471
    %v474 = vmul.f32 %v467, %v472
    %476 = vrot.lane.b32.xlu0 %v474, 32
    %v477 = vpop.permute.xlu0 %476
    %v479 = vadd.f32 %v469, %v477
    %v480 = vtanh.pop %v479
    %482 = vrot.lane.b32.xlu0 %v480, 64
    %v483 = vpop.permute.xlu0 %482
    %v485 = vmul.f32 %v467, %v483
    %487 = vrot.lane.b32.xlu0 %v485, 32
    %v488 = vpop.permute.xlu0 %487
    %s490 = scalar_lea.vmem [#allocation3], 16
    %491 = vst.msk [vmem:[%s490] sm:$0xff] %vm88, %v488
    %s492 = scalar_lea.vmem [#allocation2], 24
    %v493 = vld [vmem:[%s492] sm:$0xff]
    %v494 = vsel %vm88, %v488, 0
    %496 = vmatprep.subr.mxu0 0.0
    %497 = vmatpush1.msra.mxu0 %v174
    %498 = vmatprep.subr.mxu0 0.0
    %499 = vmatpush1.msra.mxu0 %v175
    %500 = vmatprep.subr.mxu0 0.0
    %501 = vmatpush1.msra.mxu0 %v176
    %502 = vmatprep.subr.mxu0 0.0
    %503 = vmatpush1.msra.mxu0 %v177
    %504 = vmatprep.subr.mxu0 0.0
    %505 = vmatpush1.msra.mxu0 0.0
    %506 = vmatprep.subr.mxu0 0.0
    %507 = vmatpush1.msra.mxu0 0.0
    %508 = vmatprep.subr.mxu0 0.0
    %509 = vmatpush1.msra.mxu0 0.0
    %510 = vmatprep.subr.mxu0 0.0
    %511 = vmatpush1.msra.mxu0 0.0
    %512 = vmatprep.subr.mxu0 0.0
    %513 = vmatpush1.msra.mxu0 0.0
    %514 = vmatprep.subr.mxu0 0.0
    %515 = vmatpush1.msra.mxu0 0.0
    %516 = vmatprep.subr.mxu0 0.0
    %517 = vmatpush1.msra.mxu0 0.0
    %518 = vmatprep.subr.mxu0 0.0
    %519 = vmatpush1.msra.mxu0 0.0
    %520 = vmatprep.subr.mxu0 0.0
    %521 = vmatpush1.msra.mxu0 0.0
    %522 = vmatprep.subr.mxu0 0.0
    %523 = vmatpush1.msra.mxu0 0.0
    %524 = vmatprep.subr.mxu0 0.0
    %525 = vmatpush1.msra.mxu0 0.0
    %526 = vmatprep.subr.mxu0 0.0
    %527 = vmatpush1.msra.mxu0 0.0
    %528 = vmatprep.subr.mxu0 0.0
    %529 = vmatpush1.msra.mxu0 0.0
    %530 = vmatprep.subr.mxu0 0.0
    %531 = vmatpush1.msra.mxu0 0.0
    %532 = vmatprep.subr.mxu0 0.0
    %533 = vmatpush1.msra.mxu0 0.0
    %534 = vmatprep.subr.mxu0 0.0
    %535 = vmatpush1.msra.mxu0 0.0
    %536 = vmatprep.subr.mxu0 0.0
    %537 = vmatpush1.msra.mxu0 0.0
    %538 = vmatprep.subr.mxu0 0.0
    %539 = vmatpush1.msra.mxu0 0.0
    %540 = vmatprep.subr.mxu0 0.0
    %541 = vmatpush1.msra.mxu0 0.0
    %542 = vmatprep.subr.mxu0 0.0
    %543 = vmatpush1.msra.mxu0 0.0
    %544 = vmatprep.subr.mxu0 0.0
    %545 = vmatpush1.msra.mxu0 0.0
    %546 = vmatprep.subr.mxu0 0.0
    %547 = vmatpush1.msra.mxu0 0.0
    %548 = vmatprep.subr.mxu0 0.0
    %549 = vmatpush1.msra.mxu0 0.0
    %550 = vmatprep.subr.mxu0 0.0
    %551 = vmatpush1.msra.mxu0 0.0
    %552 = vmatprep.subr.mxu0 0.0
    %553 = vmatpush1.msra.mxu0 0.0
    %554 = vmatprep.subr.mxu0 0.0
    %555 = vmatpush1.msra.mxu0 0.0
    %556 = vmatprep.subr.mxu0 0.0
    %557 = vmatpush1.msra.mxu0 0.0
    %558 = vmatprep.subr.mxu0 0.0
    %559 = vmatpush1.msra.mxu0 0.0
    %560 = vmatprep.mubr.f32.mxu0 0.0
    %561 = vmatmul.mubr.f32.gmra.mrb[0].mxu0 %v494
    %v562 = vpop.f32.mrb[0].mxu0
    %v563 = vadd.f32 0.0, %v562
    %v564 = vpop.f32.mrb[0].mxu0
    %565 = vdwg.mxu0
    %v566 = vadd.f32 %v493, %v563
    %v567 = vxor.u32 %v566, 2147483648
    %v568 = vmul.f32 %v567, 1.442695
    %v569 = vpow.pop %v568
    %v570 = vadd.f32 %v569, 1.0
    %v571 = vrcp.pop %v570
    %v572 = vmul.f32 1.0, %v571
    %v573 = vtanh.pop %v566
    %v574 = vmul.f32 %v572, %v479
    %576 = vrot.lane.b32.xlu0 %v573, 64
    %v577 = vpop.permute.xlu0 %576
    %v579 = vmul.f32 %v572, %v577
    %581 = vrot.lane.b32.xlu0 %v579, 32
    %v582 = vpop.permute.xlu0 %581
    %v584 = vadd.f32 %v574, %v582
    %v585 = vtanh.pop %v584
    %587 = vrot.lane.b32.xlu0 %v585, 64
    %v588 = vpop.permute.xlu0 %587
    %v590 = vmul.f32 %v572, %v588
    %592 = vrot.lane.b32.xlu0 %v590, 32
    %v593 = vpop.permute.xlu0 %592
    %s595 = scalar_lea.vmem [#allocation3], 24
    %596 = vst.msk [vmem:[%s595] sm:$0xff] %vm88, %v593
    %s597 = scalar_lea.vmem [#allocation2], 32
    %v598 = vld [vmem:[%s597] sm:$0xff]
    %v599 = vsel %vm88, %v593, 0
    %601 = vmatprep.subr.mxu0 0.0
    %602 = vmatpush1.msra.mxu0 %v174
    %603 = vmatprep.subr.mxu0 0.0
    %604 = vmatpush1.msra.mxu0 %v175
    %605 = vmatprep.subr.mxu0 0.0
    %606 = vmatpush1.msra.mxu0 %v176
    %607 = vmatprep.subr.mxu0 0.0
    %608 = vmatpush1.msra.mxu0 %v177
    %609 = vmatprep.subr.mxu0 0.0
    %610 = vmatpush1.msra.mxu0 0.0
    %611 = vmatprep.subr.mxu0 0.0
    %612 = vmatpush1.msra.mxu0 0.0
    %613 = vmatprep.subr.mxu0 0.0
    %614 = vmatpush1.msra.mxu0 0.0
    %615 = vmatprep.subr.mxu0 0.0
    %616 = vmatpush1.msra.mxu0 0.0
    %617 = vmatprep.subr.mxu0 0.0
    %618 = vmatpush1.msra.mxu0 0.0
    %619 = vmatprep.subr.mxu0 0.0
    %620 = vmatpush1.msra.mxu0 0.0
    %621 = vmatprep.subr.mxu0 0.0
    %622 = vmatpush1.msra.mxu0 0.0
    %623 = vmatprep.subr.mxu0 0.0
    %624 = vmatpush1.msra.mxu0 0.0
    %625 = vmatprep.subr.mxu0 0.0
    %626 = vmatpush1.msra.mxu0 0.0
    %627 = vmatprep.subr.mxu0 0.0
    %628 = vmatpush1.msra.mxu0 0.0
    %629 = vmatprep.subr.mxu0 0.0
    %630 = vmatpush1.msra.mxu0 0.0
    %631 = vmatprep.subr.mxu0 0.0
    %632 = vmatpush1.msra.mxu0 0.0
    %633 = vmatprep.subr.mxu0 0.0
    %634 = vmatpush1.msra.mxu0 0.0
    %635 = vmatprep.subr.mxu0 0.0
    %636 = vmatpush1.msra.mxu0 0.0
    %637 = vmatprep.subr.mxu0 0.0
    %638 = vmatpush1.msra.mxu0 0.0
    %639 = vmatprep.subr.mxu0 0.0
    %640 = vmatpush1.msra.mxu0 0.0
    %641 = vmatprep.subr.mxu0 0.0
    %642 = vmatpush1.msra.mxu0 0.0
    %643 = vmatprep.subr.mxu0 0.0
    %644 = vmatpush1.msra.mxu0 0.0
    %645 = vmatprep.subr.mxu0 0.0
    %646 = vmatpush1.msra.mxu0 0.0
    %647 = vmatprep.subr.mxu0 0.0
    %648 = vmatpush1.msra.mxu0 0.0
    %649 = vmatprep.subr.mxu0 0.0
    %650 = vmatpush1.msra.mxu0 0.0
    %651 = vmatprep.subr.mxu0 0.0
    %652 = vmatpush1.msra.mxu0 0.0
    %653 = vmatprep.subr.mxu0 0.0
    %654 = vmatpush1.msra.mxu0 0.0
    %655 = vmatprep.subr.mxu0 0.0
    %656 = vmatpush1.msra.mxu0 0.0
    %657 = vmatprep.subr.mxu0 0.0
    %658 = vmatpush1.msra.mxu0 0.0
    %659 = vmatprep.subr.mxu0 0.0
    %660 = vmatpush1.msra.mxu0 0.0
    %661 = vmatprep.subr.mxu0 0.0
    %662 = vmatpush1.msra.mxu0 0.0
    %663 = vmatprep.subr.mxu0 0.0
    %664 = vmatpush1.msra.mxu0 0.0
    %665 = vmatprep.mubr.f32.mxu0 0.0
    %666 = vmatmul.mubr.f32.gmra.mrb[0].mxu0 %v599
    %v667 = vpop.f32.mrb[0].mxu0
    %v668 = vadd.f32 0.0, %v667
    %v669 = vpop.f32.mrb[0].mxu0
    %670 = vdwg.mxu0
    %v671 = vadd.f32 %v598, %v668
    %v672 = vxor.u32 %v671, 2147483648
    %v673 = vmul.f32 %v672, 1.442695
    %v674 = vpow.pop %v673
    %v675 = vadd.f32 %v674, 1.0
    %v676 = vrcp.pop %v675
    %v677 = vmul.f32 1.0, %v676
    %v678 = vtanh.pop %v671
    %v679 = vmul.f32 %v677, %v584
    %681 = vrot.lane.b32.xlu0 %v678, 64
    %v682 = vpop.permute.xlu0 %681
    %v684 = vmul.f32 %v677, %v682
    %686 = vrot.lane.b32.xlu0 %v684, 32
    %v687 = vpop.permute.xlu0 %686
    %v689 = vadd.f32 %v679, %v687
    %v690 = vtanh.pop %v689
    %692 = vrot.lane.b32.xlu0 %v690, 64
    %v693 = vpop.permute.xlu0 %692
    %v695 = vmul.f32 %v677, %v693
    %697 = vrot.lane.b32.xlu0 %v695, 32
    %v698 = vpop.permute.xlu0 %697
    %s700 = scalar_lea.vmem [#allocation3], 32
    %701 = vst.msk [vmem:[%s700] sm:$0xff] %vm88, %v698
    %s702 = scalar_lea.vmem [#allocation2], 40
    %v703 = vld [vmem:[%s702] sm:$0xff]
    %v704 = vsel %vm88, %v698, 0
    %706 = vmatprep.subr.mxu0 0.0
    %707 = vmatpush1.msra.mxu0 %v174
    %708 = vmatprep.subr.mxu0 0.0
    %709 = vmatpush1.msra.mxu0 %v175
    %710 = vmatprep.subr.mxu0 0.0
    %711 = vmatpush1.msra.mxu0 %v176
    %712 = vmatprep.subr.mxu0 0.0
    %713 = vmatpush1.msra.mxu0 %v177
    %714 = vmatprep.subr.mxu0 0.0
    %715 = vmatpush1.msra.mxu0 0.0
    %716 = vmatprep.subr.mxu0 0.0
    %717 = vmatpush1.msra.mxu0 0.0
    %718 = vmatprep.subr.mxu0 0.0
    %719 = vmatpush1.msra.mxu0 0.0
    %720 = vmatprep.subr.mxu0 0.0
    %721 = vmatpush1.msra.mxu0 0.0
    %722 = vmatprep.subr.mxu0 0.0
    %723 = vmatpush1.msra.mxu0 0.0
    %724 = vmatprep.subr.mxu0 0.0
    %725 = vmatpush1.msra.mxu0 0.0
    %726 = vmatprep.subr.mxu0 0.0
    %727 = vmatpush1.msra.mxu0 0.0
    %728 = vmatprep.subr.mxu0 0.0
    %729 = vmatpush1.msra.mxu0 0.0
    %730 = vmatprep.subr.mxu0 0.0
    %731 = vmatpush1.msra.mxu0 0.0
    %732 = vmatprep.subr.mxu0 0.0
    %733 = vmatpush1.msra.mxu0 0.0
    %734 = vmatprep.subr.mxu0 0.0
    %735 = vmatpush1.msra.mxu0 0.0
    %736 = vmatprep.subr.mxu0 0.0
    %737 = vmatpush1.msra.mxu0 0.0
    %738 = vmatprep.subr.mxu0 0.0
    %739 = vmatpush1.msra.mxu0 0.0
    %740 = vmatprep.subr.mxu0 0.0
    %741 = vmatpush1.msra.mxu0 0.0
    %742 = vmatprep.subr.mxu0 0.0
    %743 = vmatpush1.msra.mxu0 0.0
    %744 = vmatprep.subr.mxu0 0.0
    %745 = vmatpush1.msra.mxu0 0.0
    %746 = vmatprep.subr.mxu0 0.0
    %747 = vmatpush1.msra.mxu0 0.0
    %748 = vmatprep.subr.mxu0 0.0
    %749 = vmatpush1.msra.mxu0 0.0
    %750 = vmatprep.subr.mxu0 0.0
    %751 = vmatpush1.msra.mxu0 0.0
    %752 = vmatprep.subr.mxu0 0.0
    %753 = vmatpush1.msra.mxu0 0.0
    %754 = vmatprep.subr.mxu0 0.0
    %755 = vmatpush1.msra.mxu0 0.0
    %756 = vmatprep.subr.mxu0 0.0
    %757 = vmatpush1.msra.mxu0 0.0
    %758 = vmatprep.subr.mxu0 0.0
    %759 = vmatpush1.msra.mxu0 0.0
    %760 = vmatprep.subr.mxu0 0.0
    %761 = vmatpush1.msra.mxu0 0.0
    %762 = vmatprep.subr.mxu0 0.0
    %763 = vmatpush1.msra.mxu0 0.0
    %764 = vmatprep.subr.mxu0 0.0
    %765 = vmatpush1.msra.mxu0 0.0
    %766 = vmatprep.subr.mxu0 0.0
    %767 = vmatpush1.msra.mxu0 0.0
    %768 = vmatprep.subr.mxu0 0.0
    %769 = vmatpush1.msra.mxu0 0.0
    %770 = vmatprep.mubr.f32.mxu0 0.0
    %771 = vmatmul.mubr.f32.gmra.mrb[0].mxu0 %v704
    %v772 = vpop.f32.mrb[0].mxu0
    %v773 = vadd.f32 0.0, %v772
    %v774 = vpop.f32.mrb[0].mxu0
    %775 = vdwg.mxu0
    %v776 = vadd.f32 %v703, %v773
    %v777 = vxor.u32 %v776, 2147483648
    %v778 = vmul.f32 %v777, 1.442695
    %v779 = vpow.pop %v778
    %v780 = vadd.f32 %v779, 1.0
    %v781 = vrcp.pop %v780
    %v782 = vmul.f32 1.0, %v781
    %v783 = vtanh.pop %v776
    %v784 = vmul.f32 %v782, %v689
    %786 = vrot.lane.b32.xlu0 %v783, 64
    %v787 = vpop.permute.xlu0 %786
    %v789 = vmul.f32 %v782, %v787
    %791 = vrot.lane.b32.xlu0 %v789, 32
    %v792 = vpop.permute.xlu0 %791
    %v794 = vadd.f32 %v784, %v792
    %v795 = vtanh.pop %v794
    %797 = vrot.lane.b32.xlu0 %v795, 64
    %v798 = vpop.permute.xlu0 %797
    %v800 = vmul.f32 %v782, %v798
    %802 = vrot.lane.b32.xlu0 %v800, 32
    %v803 = vpop.permute.xlu0 %802
    %s805 = scalar_lea.vmem [#allocation3], 40
    %806 = vst.msk [vmem:[%s805] sm:$0xff] %vm88, %v803
    %s807 = scalar_lea.vmem [#allocation2], 48
    %v808 = vld [vmem:[%s807] sm:$0xff]
    %v809 = vsel %vm88, %v803, 0
    %811 = vmatprep.subr.mxu0 0.0
    %812 = vmatpush1.msra.mxu0 %v174
    %813 = vmatprep.subr.mxu0 0.0
    %814 = vmatpush1.msra.mxu0 %v175
    %815 = vmatprep.subr.mxu0 0.0
    %816 = vmatpush1.msra.mxu0 %v176
    %817 = vmatprep.subr.mxu0 0.0
    %818 = vmatpush1.msra.mxu0 %v177
    %819 = vmatprep.subr.mxu0 0.0
    %820 = vmatpush1.msra.mxu0 0.0
    %821 = vmatprep.subr.mxu0 0.0
    %822 = vmatpush1.msra.mxu0 0.0
    %823 = vmatprep.subr.mxu0 0.0
    %824 = vmatpush1.msra.mxu0 0.0
    %825 = vmatprep.subr.mxu0 0.0
    %826 = vmatpush1.msra.mxu0 0.0
    %827 = vmatprep.subr.mxu0 0.0
    %828 = vmatpush1.msra.mxu0 0.0
    %829 = vmatprep.subr.mxu0 0.0
    %830 = vmatpush1.msra.mxu0 0.0
    %831 = vmatprep.subr.mxu0 0.0
    %832 = vmatpush1.msra.mxu0 0.0
    %833 = vmatprep.subr.mxu0 0.0
    %834 = vmatpush1.msra.mxu0 0.0
    %835 = vmatprep.subr.mxu0 0.0
    %836 = vmatpush1.msra.mxu0 0.0
    %837 = vmatprep.subr.mxu0 0.0
    %838 = vmatpush1.msra.mxu0 0.0
    %839 = vmatprep.subr.mxu0 0.0
    %840 = vmatpush1.msra.mxu0 0.0
    %841 = vmatprep.subr.mxu0 0.0
    %842 = vmatpush1.msra.mxu0 0.0
    %843 = vmatprep.subr.mxu0 0.0
    %844 = vmatpush1.msra.mxu0 0.0
    %845 = vmatprep.subr.mxu0 0.0
    %846 = vmatpush1.msra.mxu0 0.0
    %847 = vmatprep.subr.mxu0 0.0
    %848 = vmatpush1.msra.mxu0 0.0
    %849 = vmatprep.subr.mxu0 0.0
    %850 = vmatpush1.msra.mxu0 0.0
    %851 = vmatprep.subr.mxu0 0.0
    %852 = vmatpush1.msra.mxu0 0.0
    %853 = vmatprep.subr.mxu0 0.0
    %854 = vmatpush1.msra.mxu0 0.0
    %855 = vmatprep.subr.mxu0 0.0
    %856 = vmatpush1.msra.mxu0 0.0
    %857 = vmatprep.subr.mxu0 0.0
    %858 = vmatpush1.msra.mxu0 0.0
    %859 = vmatprep.subr.mxu0 0.0
    %860 = vmatpush1.msra.mxu0 0.0
    %861 = vmatprep.subr.mxu0 0.0
    %862 = vmatpush1.msra.mxu0 0.0
    %863 = vmatprep.subr.mxu0 0.0
    %864 = vmatpush1.msra.mxu0 0.0
    %865 = vmatprep.subr.mxu0 0.0
    %866 = vmatpush1.msra.mxu0 0.0
    %867 = vmatprep.subr.mxu0 0.0
    %868 = vmatpush1.msra.mxu0 0.0
    %869 = vmatprep.subr.mxu0 0.0
    %870 = vmatpush1.msra.mxu0 0.0
    %871 = vmatprep.subr.mxu0 0.0
    %872 = vmatpush1.msra.mxu0 0.0
    %873 = vmatprep.subr.mxu0 0.0
    %874 = vmatpush1.msra.mxu0 0.0
    %875 = vmatprep.mubr.f32.mxu0 0.0
    %876 = vmatmul.mubr.f32.gmra.mrb[0].mxu0 %v809
    %v877 = vpop.f32.mrb[0].mxu0
    %v878 = vadd.f32 0.0, %v877
    %v879 = vpop.f32.mrb[0].mxu0
    %880 = vdwg.mxu0
    %v881 = vadd.f32 %v808, %v878
    %v882 = vxor.u32 %v881, 2147483648
    %v883 = vmul.f32 %v882, 1.442695
    %v884 = vpow.pop %v883
    %v885 = vadd.f32 %v884, 1.0
    %v886 = vrcp.pop %v885
    %v887 = vmul.f32 1.0, %v886
    %v888 = vtanh.pop %v881
    %v889 = vmul.f32 %v887, %v794
    %891 = vrot.lane.b32.xlu0 %v888, 64
    %v892 = vpop.permute.xlu0 %891
    %v894 = vmul.f32 %v887, %v892
    %896 = vrot.lane.b32.xlu0 %v894, 32
    %v897 = vpop.permute.xlu0 %896
    %v899 = vadd.f32 %v889, %v897
    %v900 = vtanh.pop %v899
    %902 = vrot.lane.b32.xlu0 %v900, 64
    %v903 = vpop.permute.xlu0 %902
    %v905 = vmul.f32 %v887, %v903
    %907 = vrot.lane.b32.xlu0 %v905, 32
    %v908 = vpop.permute.xlu0 %907
    %s910 = scalar_lea.vmem [#allocation3], 48
    %911 = vst.msk [vmem:[%s910] sm:$0xff] %vm88, %v908
    %s912 = scalar_lea.vmem [#allocation2], 56
    %v913 = vld [vmem:[%s912] sm:$0xff]
    %v914 = vsel %vm88, %v908, 0
    %916 = vmatprep.subr.mxu0 0.0
    %917 = vmatpush1.msra.mxu0 %v174
    %918 = vmatprep.subr.mxu0 0.0
    %919 = vmatpush1.msra.mxu0 %v175
    %920 = vmatprep.subr.mxu0 0.0
    %921 = vmatpush1.msra.mxu0 %v176
    %922 = vmatprep.subr.mxu0 0.0
    %923 = vmatpush1.msra.mxu0 %v177
    %924 = vmatprep.subr.mxu0 0.0
    %925 = vmatpush1.msra.mxu0 0.0
    %926 = vmatprep.subr.mxu0 0.0
    %927 = vmatpush1.msra.mxu0 0.0
    %928 = vmatprep.subr.mxu0 0.0
    %929 = vmatpush1.msra.mxu0 0.0
    %930 = vmatprep.subr.mxu0 0.0
    %931 = vmatpush1.msra.mxu0 0.0
    %932 = vmatprep.subr.mxu0 0.0
    %933 = vmatpush1.msra.mxu0 0.0
    %934 = vmatprep.subr.mxu0 0.0
    %935 = vmatpush1.msra.mxu0 0.0
    %936 = vmatprep.subr.mxu0 0.0
    %937 = vmatpush1.msra.mxu0 0.0
    %938 = vmatprep.subr.mxu0 0.0
    %939 = vmatpush1.msra.mxu0 0.0
    %940 = vmatprep.subr.mxu0 0.0
    %941 = vmatpush1.msra.mxu0 0.0
    %942 = vmatprep.subr.mxu0 0.0
    %943 = vmatpush1.msra.mxu0 0.0
    %944 = vmatprep.subr.mxu0 0.0
    %945 = vmatpush1.msra.mxu0 0.0
    %946 = vmatprep.subr.mxu0 0.0
    %947 = vmatpush1.msra.mxu0 0.0
    %948 = vmatprep.subr.mxu0 0.0
    %949 = vmatpush1.msra.mxu0 0.0
    %950 = vmatprep.subr.mxu0 0.0
    %951 = vmatpush1.msra.mxu0 0.0
    %952 = vmatprep.subr.mxu0 0.0
    %953 = vmatpush1.msra.mxu0 0.0
    %954 = vmatprep.subr.mxu0 0.0
    %955 = vmatpush1.msra.mxu0 0.0
    %956 = vmatprep.subr.mxu0 0.0
    %957 = vmatpush1.msra.mxu0 0.0
    %958 = vmatprep.subr.mxu0 0.0
    %959 = vmatpush1.msra.mxu0 0.0
    %960 = vmatprep.subr.mxu0 0.0
    %961 = vmatpush1.msra.mxu0 0.0
    %962 = vmatprep.subr.mxu0 0.0
    %963 = vmatpush1.msra.mxu0 0.0
    %964 = vmatprep.subr.mxu0 0.0
    %965 = vmatpush1.msra.mxu0 0.0
    %966 = vmatprep.subr.mxu0 0.0
    %967 = vmatpush1.msra.mxu0 0.0
    %968 = vmatprep.subr.mxu0 0.0
    %969 = vmatpush1.msra.mxu0 0.0
    %970 = vmatprep.subr.mxu0 0.0
    %971 = vmatpush1.msra.mxu0 0.0
    %972 = vmatprep.subr.mxu0 0.0
    %973 = vmatpush1.msra.mxu0 0.0
    %974 = vmatprep.subr.mxu0 0.0
    %975 = vmatpush1.msra.mxu0 0.0
    %976 = vmatprep.subr.mxu0 0.0
    %977 = vmatpush1.msra.mxu0 0.0
    %978 = vmatprep.subr.mxu0 0.0
    %979 = vmatpush1.msra.mxu0 0.0
    %980 = vmatprep.mubr.f32.mxu0 0.0
    %981 = vmatmul.mubr.f32.gmra.mrb[0].mxu0 %v914
    %v982 = vpop.f32.mrb[0].mxu0
    %v983 = vadd.f32 0.0, %v982
    %v984 = vpop.f32.mrb[0].mxu0
    %985 = vdwg.mxu0
    %v986 = vadd.f32 %v913, %v983
    %v987 = vxor.u32 %v986, 2147483648
    %v988 = vmul.f32 %v987, 1.442695
    %v989 = vpow.pop %v988
    %v990 = vadd.f32 %v989, 1.0
    %v991 = vrcp.pop %v990
    %v992 = vmul.f32 1.0, %v991
    %v993 = vtanh.pop %v986
    %v994 = vmul.f32 %v992, %v899
    %996 = vrot.lane.b32.xlu0 %v993, 64
    %v997 = vpop.permute.xlu0 %996
    %v999 = vmul.f32 %v992, %v997
    %1001 = vrot.lane.b32.xlu0 %v999, 32
    %v1002 = vpop.permute.xlu0 %1001
    %v1004 = vadd.f32 %v994, %v1002
    %v1005 = vtanh.pop %v1004
    %1007 = vrot.lane.b32.xlu0 %v1005, 64
    %v1008 = vpop.permute.xlu0 %1007
    %v1010 = vmul.f32 %v992, %v1008
    %1012 = vrot.lane.b32.xlu0 %v1010, 32
    %v1013 = vpop.permute.xlu0 %1012
    %s1015 = scalar_lea.vmem [#allocation3], 56
    %1016 = vst.msk [vmem:[%s1015] sm:$0xff] %vm88, %v1013
    %v1017 = vld [vmem:[#allocation3] sm:$0xff]
    %v1018 = vld [vmem:[#allocation3 + $0x8] sm:$0xff]
    %v1019 = vld [vmem:[#allocation3 + $0x10] sm:$0xff]
    %v1020 = vld [vmem:[#allocation3 + $0x18] sm:$0xff]
    %v1021 = vld [vmem:[#allocation3 + $0x20] sm:$0xff]
    %v1022 = vld [vmem:[#allocation3 + $0x28] sm:$0xff]
    %v1023 = vld [vmem:[#allocation3 + $0x30] sm:$0xff]
    %v1024 = vld [vmem:[#allocation3 + $0x38] sm:$0xff]
    %v1025 = vpack.c.bf16 %v1018, %v1017
    %v1026 = vpack.c.bf16 %v1020, %v1019
    %v1027 = vpack.c.bf16 %v1022, %v1021
    %v1028 = vpack.c.bf16 %v1024, %v1023
    %v1029 = vld [vmem:[%s5] sm:$0xf]
    %v1030 = vld [vmem:[%s5 + $0x4] sm:$0xf]
    %v1031 = vld [vmem:[%s5 + $0x8] sm:$0xf]
    %v1032 = vld [vmem:[%s5 + $0xc] sm:$0xf]
    %v1033 = vld [vmem:[%s7] sm:$0x1]
    %v1035 = vlaneseq
    %v1036 = vshrl.u32 %v1035, 7
    %v1037 = vsub.s32 0, %v1036
    %v1038 = vrot.slane %v1033, %v1037
    %v1044 = vunpack.c.l.b16 %v1029
    %v1045 = vunpack.c.l.b16 %v1030
    %v1046 = vunpack.c.l.b16 %v1031
    %v1047 = vunpack.c.l.b16 %v1032
    %v1048 = vpack.c.b16 %v1045, %v1044
    %v1049 = vpack.c.b16 %v1047, %v1046
    %v1053 = vsel %vm88, %v1025, 0
    %v1056 = vsel %vm88, %v1026, 0
    %v1059 = vsel %vm88, %v1027, 0
    %v1062 = vsel %vm88, %v1028, 0
    %1064 = vmatprep.subr.bf16.mxu0 0
    %1065 = vmatpush1.bf16.msra.mxu0 %v1048
    %1066 = vmatprep.subr.bf16.mxu0 0
    %1067 = vmatpush1.bf16.msra.mxu0 %v1049
    %1068 = vmatprep.subr.bf16.mxu0 0
    %1069 = vmatpush1.bf16.msra.mxu0 0
    %1070 = vmatprep.subr.bf16.mxu0 0
    %1071 = vmatpush1.bf16.msra.mxu0 0
    %1072 = vmatprep.subr.bf16.mxu0 0
    %1073 = vmatpush1.bf16.msra.mxu0 0
    %1074 = vmatprep.subr.bf16.mxu0 0
    %1075 = vmatpush1.bf16.msra.mxu0 0
    %1076 = vmatprep.subr.bf16.mxu0 0
    %1077 = vmatpush1.bf16.msra.mxu0 0
    %1078 = vmatprep.subr.bf16.mxu0 0
    %1079 = vmatpush1.bf16.msra.mxu0 0
    %1080 = vmatprep.subr.bf16.mxu0 0
    %1081 = vmatpush1.bf16.msra.mxu0 0
    %1082 = vmatprep.subr.bf16.mxu0 0
    %1083 = vmatpush1.bf16.msra.mxu0 0
    %1084 = vmatprep.subr.bf16.mxu0 0
    %1085 = vmatpush1.bf16.msra.mxu0 0
    %1086 = vmatprep.subr.bf16.mxu0 0
    %1087 = vmatpush1.bf16.msra.mxu0 0
    %1088 = vmatprep.subr.bf16.mxu0 0
    %1089 = vmatpush1.bf16.msra.mxu0 0
    %1090 = vmatprep.subr.bf16.mxu0 0
    %1091 = vmatpush1.bf16.msra.mxu0 0
    %1092 = vmatprep.subr.bf16.mxu0 0
    %1093 = vmatpush1.bf16.msra.mxu0 0
    %1094 = vmatprep.subr.bf16.mxu0 0
    %1095 = vmatpush1.bf16.msra.mxu0 0
    %1096 = vmatprep.mubr.bf16.mxu0 0
    %1097 = vmatmul.mubr.bf16.gmra.mrb[0].mxu0 %v1053
    %v1098 = vpop.f32.mrb[0].mxu0
    %v1099 = vadd.f32 %v1038, %v1098
    %v1100 = vpop.f32.mrb[0].mxu0
    %v1101 = vpop.f32.mrb[0].mxu0
    %v1102 = vadd.f32 %v1038, %v1101
    %v1103 = vpop.f32.mrb[0].mxu0
    %1104 = vmatprep.mubr.bf16.mxu0 0
    %1105 = vmatmul.mubr.bf16.gmra.mrb[0].mxu0 %v1056
    %v1106 = vpop.f32.mrb[0].mxu0
    %v1107 = vadd.f32 %v1038, %v1106
    %v1108 = vpop.f32.mrb[0].mxu0
    %v1109 = vpop.f32.mrb[0].mxu0
    %v1110 = vadd.f32 %v1038, %v1109
    %v1111 = vpop.f32.mrb[0].mxu0
    %1112 = vmatprep.mubr.bf16.mxu0 0
    %1113 = vmatmul.mubr.bf16.gmra.mrb[0].mxu0 %v1059
    %v1114 = vpop.f32.mrb[0].mxu0
    %v1115 = vadd.f32 %v1038, %v1114
    %v1116 = vpop.f32.mrb[0].mxu0
    %v1117 = vpop.f32.mrb[0].mxu0
    %v1118 = vadd.f32 %v1038, %v1117
    %v1119 = vpop.f32.mrb[0].mxu0
    %1120 = vmatprep.mubr.bf16.mxu0 0
    %1121 = vmatmul.mubr.bf16.gmra.mrb[0].mxu0 %v1062
    %v1122 = vpop.f32.mrb[0].mxu0
    %v1123 = vadd.f32 %v1038, %v1122
    %v1124 = vpop.f32.mrb[0].mxu0
    %v1125 = vpop.f32.mrb[0].mxu0
    %v1126 = vadd.f32 %v1038, %v1125
    %v1127 = vpop.f32.mrb[0].mxu0
    %1128 = vdwg.mxu0
    %1129 = vst [vmem:[#allocation2] sm:$0xff] %v1099
    %1130 = vst [vmem:[#allocation2 + $0x8] sm:$0xff] %v1102
    %1131 = vst [vmem:[#allocation2 + $0x10] sm:$0xff] %v1107
    %1132 = vst [vmem:[#allocation2 + $0x18] sm:$0xff] %v1110
    %1133 = vst [vmem:[#allocation2 + $0x20] sm:$0xff] %v1115
    %1134 = vst [vmem:[#allocation2 + $0x28] sm:$0xff] %v1118
    %1135 = vst [vmem:[#allocation2 + $0x30] sm:$0xff] %v1123
    %1136 = vst [vmem:[#allocation2 + $0x38] sm:$0xff] %v1126
    %v1137 = vld [vmem:[%s6] sm:$0xff]
    %v1138 = vld [vmem:[%s6 + $0x8] sm:$0xff]
    %v1139 = vld [vmem:[%s6 + $0x10] sm:$0xff]
    %v1140 = vld [vmem:[%s6 + $0x18] sm:$0xff]
    %v1141 = vld [vmem:[#allocation2] sm:$0xff]
    %1142 = vmatprep.subr.mxu0 0.0
    %1143 = vmatpush1.msra.mxu0 %v1137
    %1144 = vmatprep.subr.mxu0 0.0
    %1145 = vmatpush1.msra.mxu0 %v1138
    %1146 = vmatprep.subr.mxu0 0.0
    %1147 = vmatpush1.msra.mxu0 %v1139
    %1148 = vmatprep.subr.mxu0 0.0
    %1149 = vmatpush1.msra.mxu0 %v1140
    %1150 = vmatprep.subr.mxu0 0.0
    %1151 = vmatpush1.msra.mxu0 0.0
    %1152 = vmatprep.subr.mxu0 0.0
    %1153 = vmatpush1.msra.mxu0 0.0
    %1154 = vmatprep.subr.mxu0 0.0
    %1155 = vmatpush1.msra.mxu0 0.0
    %1156 = vmatprep.subr.mxu0 0.0
    %1157 = vmatpush1.msra.mxu0 0.0
    %1158 = vmatprep.subr.mxu0 0.0
    %1159 = vmatpush1.msra.mxu0 0.0
    %1160 = vmatprep.subr.mxu0 0.0
    %1161 = vmatpush1.msra.mxu0 0.0
    %1162 = vmatprep.subr.mxu0 0.0
    %1163 = vmatpush1.msra.mxu0 0.0
    %1164 = vmatprep.subr.mxu0 0.0
    %1165 = vmatpush1.msra.mxu0 0.0
    %1166 = vmatprep.subr.mxu0 0.0
    %1167 = vmatpush1.msra.mxu0 0.0
    %1168 = vmatprep.subr.mxu0 0.0
    %1169 = vmatpush1.msra.mxu0 0.0
    %1170 = vmatprep.subr.mxu0 0.0
    %1171 = vmatpush1.msra.mxu0 0.0
    %1172 = vmatprep.subr.mxu0 0.0
    %1173 = vmatpush1.msra.mxu0 0.0
    %1174 = vmatprep.subr.mxu0 0.0
    %1175 = vmatpush1.msra.mxu0 0.0
    %1176 = vmatprep.subr.mxu0 0.0
    %1177 = vmatpush1.msra.mxu0 0.0
    %1178 = vmatprep.subr.mxu0 0.0
    %1179 = vmatpush1.msra.mxu0 0.0
    %1180 = vmatprep.subr.mxu0 0.0
    %1181 = vmatpush1.msra.mxu0 0.0
    %1182 = vmatprep.subr.mxu0 0.0
    %1183 = vmatpush1.msra.mxu0 0.0
    %1184 = vmatprep.subr.mxu0 0.0
    %1185 = vmatpush1.msra.mxu0 0.0
    %1186 = vmatprep.subr.mxu0 0.0
    %1187 = vmatpush1.msra.mxu0 0.0
    %1188 = vmatprep.subr.mxu0 0.0
    %1189 = vmatpush1.msra.mxu0 0.0
    %1190 = vmatprep.subr.mxu0 0.0
    %1191 = vmatpush1.msra.mxu0 0.0
    %1192 = vmatprep.subr.mxu0 0.0
    %1193 = vmatpush1.msra.mxu0 0.0
    %1194 = vmatprep.subr.mxu0 0.0
    %1195 = vmatpush1.msra.mxu0 0.0
    %1196 = vmatprep.subr.mxu0 0.0
    %1197 = vmatpush1.msra.mxu0 0.0
    %1198 = vmatprep.subr.mxu0 0.0
    %1199 = vmatpush1.msra.mxu0 0.0
    %1200 = vmatprep.subr.mxu0 0.0
    %1201 = vmatpush1.msra.mxu0 0.0
    %1202 = vmatprep.subr.mxu0 0.0
    %1203 = vmatpush1.msra.mxu0 0.0
    %1204 = vmatprep.subr.mxu0 0.0
    %1205 = vmatpush1.msra.mxu0 0.0
    %1206 = vmatprep.mubr.f32.mxu0 0.0
    %1207 = vmatmul.mubr.f32.gmra.mrb[0].mxu0 %v180
    %v1208 = vpop.f32.mrb[0].mxu0
    %v1209 = vadd.f32 0.0, %v1208
    %v1210 = vpop.f32.mrb[0].mxu0
    %1211 = vdwg.mxu0
    %v1212 = vadd.f32 %v1141, %v1209
    %v1213 = vxor.u32 %v1212, 2147483648
    %v1214 = vmul.f32 %v1213, 1.442695
    %v1215 = vpow.pop %v1214
    %v1216 = vadd.f32 %v1215, 1.0
    %v1217 = vrcp.pop %v1216
    %v1218 = vmul.f32 1.0, %v1217
    %v1219 = vtanh.pop %v1212
    %v1220 = vmul.f32 %v1218, 0.0
    %1222 = vrot.lane.b32.xlu0 %v1219, 64
    %v1223 = vpop.permute.xlu0 %1222
    %v1225 = vmul.f32 %v1218, %v1223
    %1227 = vrot.lane.b32.xlu0 %v1225, 32
    %v1228 = vpop.permute.xlu0 %1227
    %v1230 = vadd.f32 %v1220, %v1228
    %v1231 = vtanh.pop %v1230
    %1233 = vrot.lane.b32.xlu0 %v1231, 64
    %v1234 = vpop.permute.xlu0 %1233
    %v1236 = vmul.f32 %v1218, %v1234
    %1238 = vrot.lane.b32.xlu0 %v1236, 32
    %v1239 = vpop.permute.xlu0 %1238
    %1241 = vst.msk [vmem:[#allocation4] sm:$0xff] %vm88, %v1239
    %v1242 = vld [vmem:[%s282] sm:$0xff]
    %v1243 = vsel %vm88, %v1239, 0
    %1245 = vmatprep.subr.mxu0 0.0
    %1246 = vmatpush1.msra.mxu0 %v1137
    %1247 = vmatprep.subr.mxu0 0.0
    %1248 = vmatpush1.msra.mxu0 %v1138
    %1249 = vmatprep.subr.mxu0 0.0
    %1250 = vmatpush1.msra.mxu0 %v1139
    %1251 = vmatprep.subr.mxu0 0.0
    %1252 = vmatpush1.msra.mxu0 %v1140
    %1253 = vmatprep.subr.mxu0 0.0
    %1254 = vmatpush1.msra.mxu0 0.0
    %1255 = vmatprep.subr.mxu0 0.0
    %1256 = vmatpush1.msra.mxu0 0.0
    %1257 = vmatprep.subr.mxu0 0.0
    %1258 = vmatpush1.msra.mxu0 0.0
    %1259 = vmatprep.subr.mxu0 0.0
    %1260 = vmatpush1.msra.mxu0 0.0
    %1261 = vmatprep.subr.mxu0 0.0
    %1262 = vmatpush1.msra.mxu0 0.0
    %1263 = vmatprep.subr.mxu0 0.0
    %1264 = vmatpush1.msra.mxu0 0.0
    %1265 = vmatprep.subr.mxu0 0.0
    %1266 = vmatpush1.msra.mxu0 0.0
    %1267 = vmatprep.subr.mxu0 0.0
    %1268 = vmatpush1.msra.mxu0 0.0
    %1269 = vmatprep.subr.mxu0 0.0
    %1270 = vmatpush1.msra.mxu0 0.0
    %1271 = vmatprep.subr.mxu0 0.0
    %1272 = vmatpush1.msra.mxu0 0.0
    %1273 = vmatprep.subr.mxu0 0.0
    %1274 = vmatpush1.msra.mxu0 0.0
    %1275 = vmatprep.subr.mxu0 0.0
    %1276 = vmatpush1.msra.mxu0 0.0
    %1277 = vmatprep.subr.mxu0 0.0
    %1278 = vmatpush1.msra.mxu0 0.0
    %1279 = vmatprep.subr.mxu0 0.0
    %1280 = vmatpush1.msra.mxu0 0.0
    %1281 = vmatprep.subr.mxu0 0.0
    %1282 = vmatpush1.msra.mxu0 0.0
    %1283 = vmatprep.subr.mxu0 0.0
    %1284 = vmatpush1.msra.mxu0 0.0
    %1285 = vmatprep.subr.mxu0 0.0
    %1286 = vmatpush1.msra.mxu0 0.0
    %1287 = vmatprep.subr.mxu0 0.0
    %1288 = vmatpush1.msra.mxu0 0.0
    %1289 = vmatprep.subr.mxu0 0.0
    %1290 = vmatpush1.msra.mxu0 0.0
    %1291 = vmatprep.subr.mxu0 0.0
    %1292 = vmatpush1.msra.mxu0 0.0
    %1293 = vmatprep.subr.mxu0 0.0
    %1294 = vmatpush1.msra.mxu0 0.0
    %1295 = vmatprep.subr.mxu0 0.0
    %1296 = vmatpush1.msra.mxu0 0.0
    %1297 = vmatprep.subr.mxu0 0.0
    %1298 = vmatpush1.msra.mxu0 0.0
    %1299 = vmatprep.subr.mxu0 0.0
    %1300 = vmatpush1.msra.mxu0 0.0
    %1301 = vmatprep.subr.mxu0 0.0
    %1302 = vmatpush1.msra.mxu0 0.0
    %1303 = vmatprep.subr.mxu0 0.0
    %1304 = vmatpush1.msra.mxu0 0.0
    %1305 = vmatprep.subr.mxu0 0.0
    %1306 = vmatpush1.msra.mxu0 0.0
    %1307 = vmatprep.subr.mxu0 0.0
    %1308 = vmatpush1.msra.mxu0 0.0
    %1309 = vmatprep.mubr.f32.mxu0 0.0
    %1310 = vmatmul.mubr.f32.gmra.mrb[0].mxu0 %v1243
    %v1311 = vpop.f32.mrb[0].mxu0
    %v1312 = vadd.f32 0.0, %v1311
    %v1313 = vpop.f32.mrb[0].mxu0
    %1314 = vdwg.mxu0
    %v1315 = vadd.f32 %v1242, %v1312
    %v1316 = vxor.u32 %v1315, 2147483648
    %v1317 = vmul.f32 %v1316, 1.442695
    %v1318 = vpow.pop %v1317
    %v1319 = vadd.f32 %v1318, 1.0
    %v1320 = vrcp.pop %v1319
    %v1321 = vmul.f32 1.0, %v1320
    %v1322 = vtanh.pop %v1315
    %v1323 = vmul.f32 %v1321, %v1230
    %1325 = vrot.lane.b32.xlu0 %v1322, 64
    %v1326 = vpop.permute.xlu0 %1325
    %v1328 = vmul.f32 %v1321, %v1326
    %1330 = vrot.lane.b32.xlu0 %v1328, 32
    %v1331 = vpop.permute.xlu0 %1330
    %v1333 = vadd.f32 %v1323, %v1331
    %v1334 = vtanh.pop %v1333
    %1336 = vrot.lane.b32.xlu0 %v1334, 64
    %v1337 = vpop.permute.xlu0 %1336
    %v1339 = vmul.f32 %v1321, %v1337
    %1341 = vrot.lane.b32.xlu0 %v1339, 32
    %v1342 = vpop.permute.xlu0 %1341
    %s1344 = scalar_lea.vmem [#allocation4], 8
    %1345 = vst.msk [vmem:[%s1344] sm:$0xff] %vm88, %v1342
    %v1346 = vld [vmem:[%s387] sm:$0xff]
    %v1347 = vsel %vm88, %v1342, 0
    %1349 = vmatprep.subr.mxu0 0.0
    %1350 = vmatpush1.msra.mxu0 %v1137
    %1351 = vmatprep.subr.mxu0 0.0
    %1352 = vmatpush1.msra.mxu0 %v1138
    %1353 = vmatprep.subr.mxu0 0.0
    %1354 = vmatpush1.msra.mxu0 %v1139
    %1355 = vmatprep.subr.mxu0 0.0
    %1356 = vmatpush1.msra.mxu0 %v1140
    %1357 = vmatprep.subr.mxu0 0.0
    %1358 = vmatpush1.msra.mxu0 0.0
    %1359 = vmatprep.subr.mxu0 0.0
    %1360 = vmatpush1.msra.mxu0 0.0
    %1361 = vmatprep.subr.mxu0 0.0
    %1362 = vmatpush1.msra.mxu0 0.0
    %1363 = vmatprep.subr.mxu0 0.0
    %1364 = vmatpush1.msra.mxu0 0.0
    %1365 = vmatprep.subr.mxu0 0.0
    %1366 = vmatpush1.msra.mxu0 0.0
    %1367 = vmatprep.subr.mxu0 0.0
    %1368 = vmatpush1.msra.mxu0 0.0
    %1369 = vmatprep.subr.mxu0 0.0
    %1370 = vmatpush1.msra.mxu0 0.0
    %1371 = vmatprep.subr.mxu0 0.0
    %1372 = vmatpush1.msra.mxu0 0.0
    %1373 = vmatprep.subr.mxu0 0.0
    %1374 = vmatpush1.msra.mxu0 0.0
    %1375 = vmatprep.subr.mxu0 0.0
    %1376 = vmatpush1.msra.mxu0 0.0
    %1377 = vmatprep.subr.mxu0 0.0
    %1378 = vmatpush1.msra.mxu0 0.0
    %1379 = vmatprep.subr.mxu0 0.0
    %1380 = vmatpush1.msra.mxu0 0.0
    %1381 = vmatprep.subr.mxu0 0.0
    %1382 = vmatpush1.msra.mxu0 0.0
    %1383 = vmatprep.subr.mxu0 0.0
    %1384 = vmatpush1.msra.mxu0 0.0
    %1385 = vmatprep.subr.mxu0 0.0
    %1386 = vmatpush1.msra.mxu0 0.0
    %1387 = vmatprep.subr.mxu0 0.0
    %1388 = vmatpush1.msra.mxu0 0.0
    %1389 = vmatprep.subr.mxu0 0.0
    %1390 = vmatpush1.msra.mxu0 0.0
    %1391 = vmatprep.subr.mxu0 0.0
    %1392 = vmatpush1.msra.mxu0 0.0
    %1393 = vmatprep.subr.mxu0 0.0
    %1394 = vmatpush1.msra.mxu0 0.0
    %1395 = vmatprep.subr.mxu0 0.0
    %1396 = vmatpush1.msra.mxu0 0.0
    %1397 = vmatprep.subr.mxu0 0.0
    %1398 = vmatpush1.msra.mxu0 0.0
    %1399 = vmatprep.subr.mxu0 0.0
    %1400 = vmatpush1.msra.mxu0 0.0
    %1401 = vmatprep.subr.mxu0 0.0
    %1402 = vmatpush1.msra.mxu0 0.0
    %1403 = vmatprep.subr.mxu0 0.0
    %1404 = vmatpush1.msra.mxu0 0.0
    %1405 = vmatprep.subr.mxu0 0.0
    %1406 = vmatpush1.msra.mxu0 0.0
    %1407 = vmatprep.subr.mxu0 0.0
    %1408 = vmatpush1.msra.mxu0 0.0
    %1409 = vmatprep.subr.mxu0 0.0
    %1410 = vmatpush1.msra.mxu0 0.0
    %1411 = vmatprep.subr.mxu0 0.0
    %1412 = vmatpush1.msra.mxu0 0.0
    %1413 = vmatprep.mubr.f32.mxu0 0.0
    %1414 = vmatmul.mubr.f32.gmra.mrb[0].mxu0 %v1347
    %v1415 = vpop.f32.mrb[0].mxu0
    %v1416 = vadd.f32 0.0, %v1415
    %v1417 = vpop.f32.mrb[0].mxu0
    %1418 = vdwg.mxu0
    %v1419 = vadd.f32 %v1346, %v1416
    %v1420 = vxor.u32 %v1419, 2147483648
    %v1421 = vmul.f32 %v1420, 1.442695
    %v1422 = vpow.pop %v1421
    %v1423 = vadd.f32 %v1422, 1.0
    %v1424 = vrcp.pop %v1423
    %v1425 = vmul.f32 1.0, %v1424
    %v1426 = vtanh.pop %v1419
    %v1427 = vmul.f32 %v1425, %v1333
    %1429 = vrot.lane.b32.xlu0 %v1426, 64
    %v1430 = vpop.permute.xlu0 %1429
    %v1432 = vmul.f32 %v1425, %v1430
    %1434 = vrot.lane.b32.xlu0 %v1432, 32
    %v1435 = vpop.permute.xlu0 %1434
    %v1437 = vadd.f32 %v1427, %v1435
    %v1438 = vtanh.pop %v1437
    %1440 = vrot.lane.b32.xlu0 %v1438, 64
    %v1441 = vpop.permute.xlu0 %1440
    %v1443 = vmul.f32 %v1425, %v1441
    %1445 = vrot.lane.b32.xlu0 %v1443, 32
    %v1446 = vpop.permute.xlu0 %1445
    %s1448 = scalar_lea.vmem [#allocation4], 16
    %1449 = vst.msk [vmem:[%s1448] sm:$0xff] %vm88, %v1446
    %v1450 = vld [vmem:[%s492] sm:$0xff]
    %v1451 = vsel %vm88, %v1446, 0
    %1453 = vmatprep.subr.mxu0 0.0
    %1454 = vmatpush1.msra.mxu0 %v1137
    %1455 = vmatprep.subr.mxu0 0.0
    %1456 = vmatpush1.msra.mxu0 %v1138
    %1457 = vmatprep.subr.mxu0 0.0
    %1458 = vmatpush1.msra.mxu0 %v1139
    %1459 = vmatprep.subr.mxu0 0.0
    %1460 = vmatpush1.msra.mxu0 %v1140
    %1461 = vmatprep.subr.mxu0 0.0
    %1462 = vmatpush1.msra.mxu0 0.0
    %1463 = vmatprep.subr.mxu0 0.0
    %1464 = vmatpush1.msra.mxu0 0.0
    %1465 = vmatprep.subr.mxu0 0.0
    %1466 = vmatpush1.msra.mxu0 0.0
    %1467 = vmatprep.subr.mxu0 0.0
    %1468 = vmatpush1.msra.mxu0 0.0
    %1469 = vmatprep.subr.mxu0 0.0
    %1470 = vmatpush1.msra.mxu0 0.0
    %1471 = vmatprep.subr.mxu0 0.0
    %1472 = vmatpush1.msra.mxu0 0.0
    %1473 = vmatprep.subr.mxu0 0.0
    %1474 = vmatpush1.msra.mxu0 0.0
    %1475 = vmatprep.subr.mxu0 0.0
    %1476 = vmatpush1.msra.mxu0 0.0
    %1477 = vmatprep.subr.mxu0 0.0
    %1478 = vmatpush1.msra.mxu0 0.0
    %1479 = vmatprep.subr.mxu0 0.0
    %1480 = vmatpush1.msra.mxu0 0.0
    %1481 = vmatprep.subr.mxu0 0.0
    %1482 = vmatpush1.msra.mxu0 0.0
    %1483 = vmatprep.subr.mxu0 0.0
    %1484 = vmatpush1.msra.mxu0 0.0
    %1485 = vmatprep.subr.mxu0 0.0
    %1486 = vmatpush1.msra.mxu0 0.0
    %1487 = vmatprep.subr.mxu0 0.0
    %1488 = vmatpush1.msra.mxu0 0.0
    %1489 = vmatprep.subr.mxu0 0.0
    %1490 = vmatpush1.msra.mxu0 0.0
    %1491 = vmatprep.subr.mxu0 0.0
    %1492 = vmatpush1.msra.mxu0 0.0
    %1493 = vmatprep.subr.mxu0 0.0
    %1494 = vmatpush1.msra.mxu0 0.0
    %1495 = vmatprep.subr.mxu0 0.0
    %1496 = vmatpush1.msra.mxu0 0.0
    %1497 = vmatprep.subr.mxu0 0.0
    %1498 = vmatpush1.msra.mxu0 0.0
    %1499 = vmatprep.subr.mxu0 0.0
    %1500 = vmatpush1.msra.mxu0 0.0
    %1501 = vmatprep.subr.mxu0 0.0
    %1502 = vmatpush1.msra.mxu0 0.0
    %1503 = vmatprep.subr.mxu0 0.0
    %1504 = vmatpush1.msra.mxu0 0.0
    %1505 = vmatprep.subr.mxu0 0.0
    %1506 = vmatpush1.msra.mxu0 0.0
    %1507 = vmatprep.subr.mxu0 0.0
    %1508 = vmatpush1.msra.mxu0 0.0
    %1509 = vmatprep.subr.mxu0 0.0
    %1510 = vmatpush1.msra.mxu0 0.0
    %1511 = vmatprep.subr.mxu0 0.0
    %1512 = vmatpush1.msra.mxu0 0.0
    %1513 = vmatprep.subr.mxu0 0.0
    %1514 = vmatpush1.msra.mxu0 0.0
    %1515 = vmatprep.subr.mxu0 0.0
    %1516 = vmatpush1.msra.mxu0 0.0
    %1517 = vmatprep.mubr.f32.mxu0 0.0
    %1518 = vmatmul.mubr.f32.gmra.mrb[0].mxu0 %v1451
    %v1519 = vpop.f32.mrb[0].mxu0
    %v1520 = vadd.f32 0.0, %v1519
    %v1521 = vpop.f32.mrb[0].mxu0
    %1522 = vdwg.mxu0
    %v1523 = vadd.f32 %v1450, %v1520
    %v1524 = vxor.u32 %v1523, 2147483648
    %v1525 = vmul.f32 %v1524, 1.442695
    %v1526 = vpow.pop %v1525
    %v1527 = vadd.f32 %v1526, 1.0
    %v1528 = vrcp.pop %v1527
    %v1529 = vmul.f32 1.0, %v1528
    %v1530 = vtanh.pop %v1523
    %v1531 = vmul.f32 %v1529, %v1437
    %1533 = vrot.lane.b32.xlu0 %v1530, 64
    %v1534 = vpop.permute.xlu0 %1533
    %v1536 = vmul.f32 %v1529, %v1534
    %1538 = vrot.lane.b32.xlu0 %v1536, 32
    %v1539 = vpop.permute.xlu0 %1538
    %v1541 = vadd.f32 %v1531, %v1539
    %v1542 = vtanh.pop %v1541
    %1544 = vrot.lane.b32.xlu0 %v1542, 64
    %v1545 = vpop.permute.xlu0 %1544
    %v1547 = vmul.f32 %v1529, %v1545
    %1549 = vrot.lane.b32.xlu0 %v1547, 32
    %v1550 = vpop.permute.xlu0 %1549
    %s1552 = scalar_lea.vmem [#allocation4], 24
    %1553 = vst.msk [vmem:[%s1552] sm:$0xff] %vm88, %v1550
    %v1554 = vld [vmem:[%s597] sm:$0xff]
    %v1555 = vsel %vm88, %v1550, 0
    %1557 = vmatprep.subr.mxu0 0.0
    %1558 = vmatpush1.msra.mxu0 %v1137
    %1559 = vmatprep.subr.mxu0 0.0
    %1560 = vmatpush1.msra.mxu0 %v1138
    %1561 = vmatprep.subr.mxu0 0.0
    %1562 = vmatpush1.msra.mxu0 %v1139
    %1563 = vmatprep.subr.mxu0 0.0
    %1564 = vmatpush1.msra.mxu0 %v1140
    %1565 = vmatprep.subr.mxu0 0.0
    %1566 = vmatpush1.msra.mxu0 0.0
    %1567 = vmatprep.subr.mxu0 0.0
    %1568 = vmatpush1.msra.mxu0 0.0
    %1569 = vmatprep.subr.mxu0 0.0
    %1570 = vmatpush1.msra.mxu0 0.0
    %1571 = vmatprep.subr.mxu0 0.0
    %1572 = vmatpush1.msra.mxu0 0.0
    %1573 = vmatprep.subr.mxu0 0.0
    %1574 = vmatpush1.msra.mxu0 0.0
    %1575 = vmatprep.subr.mxu0 0.0
    %1576 = vmatpush1.msra.mxu0 0.0
    %1577 = vmatprep.subr.mxu0 0.0
    %1578 = vmatpush1.msra.mxu0 0.0
    %1579 = vmatprep.subr.mxu0 0.0
    %1580 = vmatpush1.msra.mxu0 0.0
    %1581 = vmatprep.subr.mxu0 0.0
    %1582 = vmatpush1.msra.mxu0 0.0
    %1583 = vmatprep.subr.mxu0 0.0
    %1584 = vmatpush1.msra.mxu0 0.0
    %1585 = vmatprep.subr.mxu0 0.0
    %1586 = vmatpush1.msra.mxu0 0.0
    %1587 = vmatprep.subr.mxu0 0.0
    %1588 = vmatpush1.msra.mxu0 0.0
    %1589 = vmatprep.subr.mxu0 0.0
    %1590 = vmatpush1.msra.mxu0 0.0
    %1591 = vmatprep.subr.mxu0 0.0
    %1592 = vmatpush1.msra.mxu0 0.0
    %1593 = vmatprep.subr.mxu0 0.0
    %1594 = vmatpush1.msra.mxu0 0.0
    %1595 = vmatprep.subr.mxu0 0.0
    %1596 = vmatpush1.msra.mxu0 0.0
    %1597 = vmatprep.subr.mxu0 0.0
    %1598 = vmatpush1.msra.mxu0 0.0
    %1599 = vmatprep.subr.mxu0 0.0
    %1600 = vmatpush1.msra.mxu0 0.0
    %1601 = vmatprep.subr.mxu0 0.0
    %1602 = vmatpush1.msra.mxu0 0.0
    %1603 = vmatprep.subr.mxu0 0.0
    %1604 = vmatpush1.msra.mxu0 0.0
    %1605 = vmatprep.subr.mxu0 0.0
    %1606 = vmatpush1.msra.mxu0 0.0
    %1607 = vmatprep.subr.mxu0 0.0
    %1608 = vmatpush1.msra.mxu0 0.0
    %1609 = vmatprep.subr.mxu0 0.0
    %1610 = vmatpush1.msra.mxu0 0.0
    %1611 = vmatprep.subr.mxu0 0.0
    %1612 = vmatpush1.msra.mxu0 0.0
    %1613 = vmatprep.subr.mxu0 0.0
    %1614 = vmatpush1.msra.mxu0 0.0
    %1615 = vmatprep.subr.mxu0 0.0
    %1616 = vmatpush1.msra.mxu0 0.0
    %1617 = vmatprep.subr.mxu0 0.0
    %1618 = vmatpush1.msra.mxu0 0.0
    %1619 = vmatprep.subr.mxu0 0.0
    %1620 = vmatpush1.msra.mxu0 0.0
    %1621 = vmatprep.mubr.f32.mxu0 0.0
    %1622 = vmatmul.mubr.f32.gmra.mrb[0].mxu0 %v1555
    %v1623 = vpop.f32.mrb[0].mxu0
    %v1624 = vadd.f32 0.0, %v1623
    %v1625 = vpop.f32.mrb[0].mxu0
    %1626 = vdwg.mxu0
    %v1627 = vadd.f32 %v1554, %v1624
    %v1628 = vxor.u32 %v1627, 2147483648
    %v1629 = vmul.f32 %v1628, 1.442695
    %v1630 = vpow.pop %v1629
    %v1631 = vadd.f32 %v1630, 1.0
    %v1632 = vrcp.pop %v1631
    %v1633 = vmul.f32 1.0, %v1632
    %v1634 = vtanh.pop %v1627
    %v1635 = vmul.f32 %v1633, %v1541
    %1637 = vrot.lane.b32.xlu0 %v1634, 64
    %v1638 = vpop.permute.xlu0 %1637
    %v1640 = vmul.f32 %v1633, %v1638
    %1642 = vrot.lane.b32.xlu0 %v1640, 32
    %v1643 = vpop.permute.xlu0 %1642
    %v1645 = vadd.f32 %v1635, %v1643
    %v1646 = vtanh.pop %v1645
    %1648 = vrot.lane.b32.xlu0 %v1646, 64
    %v1649 = vpop.permute.xlu0 %1648
    %v1651 = vmul.f32 %v1633, %v1649
    %1653 = vrot.lane.b32.xlu0 %v1651, 32
    %v1654 = vpop.permute.xlu0 %1653
    %s1656 = scalar_lea.vmem [#allocation4], 32
    %1657 = vst.msk [vmem:[%s1656] sm:$0xff] %vm88, %v1654
    %v1658 = vld [vmem:[%s702] sm:$0xff]
    %v1659 = vsel %vm88, %v1654, 0
    %1661 = vmatprep.subr.mxu0 0.0
    %1662 = vmatpush1.msra.mxu0 %v1137
    %1663 = vmatprep.subr.mxu0 0.0
    %1664 = vmatpush1.msra.mxu0 %v1138
    %1665 = vmatprep.subr.mxu0 0.0
    %1666 = vmatpush1.msra.mxu0 %v1139
    %1667 = vmatprep.subr.mxu0 0.0
    %1668 = vmatpush1.msra.mxu0 %v1140
    %1669 = vmatprep.subr.mxu0 0.0
    %1670 = vmatpush1.msra.mxu0 0.0
    %1671 = vmatprep.subr.mxu0 0.0
    %1672 = vmatpush1.msra.mxu0 0.0
    %1673 = vmatprep.subr.mxu0 0.0
    %1674 = vmatpush1.msra.mxu0 0.0
    %1675 = vmatprep.subr.mxu0 0.0
    %1676 = vmatpush1.msra.mxu0 0.0
    %1677 = vmatprep.subr.mxu0 0.0
    %1678 = vmatpush1.msra.mxu0 0.0
    %1679 = vmatprep.subr.mxu0 0.0
    %1680 = vmatpush1.msra.mxu0 0.0
    %1681 = vmatprep.subr.mxu0 0.0
    %1682 = vmatpush1.msra.mxu0 0.0
    %1683 = vmatprep.subr.mxu0 0.0
    %1684 = vmatpush1.msra.mxu0 0.0
    %1685 = vmatprep.subr.mxu0 0.0
    %1686 = vmatpush1.msra.mxu0 0.0
    %1687 = vmatprep.subr.mxu0 0.0
    %1688 = vmatpush1.msra.mxu0 0.0
    %1689 = vmatprep.subr.mxu0 0.0
    %1690 = vmatpush1.msra.mxu0 0.0
    %1691 = vmatprep.subr.mxu0 0.0
    %1692 = vmatpush1.msra.mxu0 0.0
    %1693 = vmatprep.subr.mxu0 0.0
    %1694 = vmatpush1.msra.mxu0 0.0
    %1695 = vmatprep.subr.mxu0 0.0
    %1696 = vmatpush1.msra.mxu0 0.0
    %1697 = vmatprep.subr.mxu0 0.0
    %1698 = vmatpush1.msra.mxu0 0.0
    %1699 = vmatprep.subr.mxu0 0.0
    %1700 = vmatpush1.msra.mxu0 0.0
    %1701 = vmatprep.subr.mxu0 0.0
    %1702 = vmatpush1.msra.mxu0 0.0
    %1703 = vmatprep.subr.mxu0 0.0
    %1704 = vmatpush1.msra.mxu0 0.0
    %1705 = vmatprep.subr.mxu0 0.0
    %1706 = vmatpush1.msra.mxu0 0.0
    %1707 = vmatprep.subr.mxu0 0.0
    %1708 = vmatpush1.msra.mxu0 0.0
    %1709 = vmatprep.subr.mxu0 0.0
    %1710 = vmatpush1.msra.mxu0 0.0
    %1711 = vmatprep.subr.mxu0 0.0
    %1712 = vmatpush1.msra.mxu0 0.0
    %1713 = vmatprep.subr.mxu0 0.0
    %1714 = vmatpush1.msra.mxu0 0.0
    %1715 = vmatprep.subr.mxu0 0.0
    %1716 = vmatpush1.msra.mxu0 0.0
    %1717 = vmatprep.subr.mxu0 0.0
    %1718 = vmatpush1.msra.mxu0 0.0
    %1719 = vmatprep.subr.mxu0 0.0
    %1720 = vmatpush1.msra.mxu0 0.0
    %1721 = vmatprep.subr.mxu0 0.0
    %1722 = vmatpush1.msra.mxu0 0.0
    %1723 = vmatprep.subr.mxu0 0.0
    %1724 = vmatpush1.msra.mxu0 0.0
    %1725 = vmatprep.mubr.f32.mxu0 0.0
    %1726 = vmatmul.mubr.f32.gmra.mrb[0].mxu0 %v1659
    %v1727 = vpop.f32.mrb[0].mxu0
    %v1728 = vadd.f32 0.0, %v1727
    %v1729 = vpop.f32.mrb[0].mxu0
    %1730 = vdwg.mxu0
    %v1731 = vadd.f32 %v1658, %v1728
    %v1732 = vxor.u32 %v1731, 2147483648
    %v1733 = vmul.f32 %v1732, 1.442695
    %v1734 = vpow.pop %v1733
    %v1735 = vadd.f32 %v1734, 1.0
    %v1736 = vrcp.pop %v1735
    %v1737 = vmul.f32 1.0, %v1736
    %v1738 = vtanh.pop %v1731
    %v1739 = vmul.f32 %v1737, %v1645
    %1741 = vrot.lane.b32.xlu0 %v1738, 64
    %v1742 = vpop.permute.xlu0 %1741
    %v1744 = vmul.f32 %v1737, %v1742
    %1746 = vrot.lane.b32.xlu0 %v1744, 32
    %v1747 = vpop.permute.xlu0 %1746
    %v1749 = vadd.f32 %v1739, %v1747
    %v1750 = vtanh.pop %v1749
    %1752 = vrot.lane.b32.xlu0 %v1750, 64
    %v1753 = vpop.permute.xlu0 %1752
    %v1755 = vmul.f32 %v1737, %v1753
    %1757 = vrot.lane.b32.xlu0 %v1755, 32
    %v1758 = vpop.permute.xlu0 %1757
    %s1760 = scalar_lea.vmem [#allocation4], 40
    %1761 = vst.msk [vmem:[%s1760] sm:$0xff] %vm88, %v1758
    %v1762 = vld [vmem:[%s807] sm:$0xff]
    %v1763 = vsel %vm88, %v1758, 0
    %1765 = vmatprep.subr.mxu0 0.0
    %1766 = vmatpush1.msra.mxu0 %v1137
    %1767 = vmatprep.subr.mxu0 0.0
    %1768 = vmatpush1.msra.mxu0 %v1138
    %1769 = vmatprep.subr.mxu0 0.0
    %1770 = vmatpush1.msra.mxu0 %v1139
    %1771 = vmatprep.subr.mxu0 0.0
    %1772 = vmatpush1.msra.mxu0 %v1140
    %1773 = vmatprep.subr.mxu0 0.0
    %1774 = vmatpush1.msra.mxu0 0.0
    %1775 = vmatprep.subr.mxu0 0.0
    %1776 = vmatpush1.msra.mxu0 0.0
    %1777 = vmatprep.subr.mxu0 0.0
    %1778 = vmatpush1.msra.mxu0 0.0
    %1779 = vmatprep.subr.mxu0 0.0
    %1780 = vmatpush1.msra.mxu0 0.0
    %1781 = vmatprep.subr.mxu0 0.0
    %1782 = vmatpush1.msra.mxu0 0.0
    %1783 = vmatprep.subr.mxu0 0.0
    %1784 = vmatpush1.msra.mxu0 0.0
    %1785 = vmatprep.subr.mxu0 0.0
    %1786 = vmatpush1.msra.mxu0 0.0
    %1787 = vmatprep.subr.mxu0 0.0
    %1788 = vmatpush1.msra.mxu0 0.0
    %1789 = vmatprep.subr.mxu0 0.0
    %1790 = vmatpush1.msra.mxu0 0.0
    %1791 = vmatprep.subr.mxu0 0.0
    %1792 = vmatpush1.msra.mxu0 0.0
    %1793 = vmatprep.subr.mxu0 0.0
    %1794 = vmatpush1.msra.mxu0 0.0
    %1795 = vmatprep.subr.mxu0 0.0
    %1796 = vmatpush1.msra.mxu0 0.0
    %1797 = vmatprep.subr.mxu0 0.0
    %1798 = vmatpush1.msra.mxu0 0.0
    %1799 = vmatprep.subr.mxu0 0.0
    %1800 = vmatpush1.msra.mxu0 0.0
    %1801 = vmatprep.subr.mxu0 0.0
    %1802 = vmatpush1.msra.mxu0 0.0
    %1803 = vmatprep.subr.mxu0 0.0
    %1804 = vmatpush1.msra.mxu0 0.0
    %1805 = vmatprep.subr.mxu0 0.0
    %1806 = vmatpush1.msra.mxu0 0.0
    %1807 = vmatprep.subr.mxu0 0.0
    %1808 = vmatpush1.msra.mxu0 0.0
    %1809 = vmatprep.subr.mxu0 0.0
    %1810 = vmatpush1.msra.mxu0 0.0
    %1811 = vmatprep.subr.mxu0 0.0
    %1812 = vmatpush1.msra.mxu0 0.0
    %1813 = vmatprep.subr.mxu0 0.0
    %1814 = vmatpush1.msra.mxu0 0.0
    %1815 = vmatprep.subr.mxu0 0.0
    %1816 = vmatpush1.msra.mxu0 0.0
    %1817 = vmatprep.subr.mxu0 0.0
    %1818 = vmatpush1.msra.mxu0 0.0
    %1819 = vmatprep.subr.mxu0 0.0
    %1820 = vmatpush1.msra.mxu0 0.0
    %1821 = vmatprep.subr.mxu0 0.0
    %1822 = vmatpush1.msra.mxu0 0.0
    %1823 = vmatprep.subr.mxu0 0.0
    %1824 = vmatpush1.msra.mxu0 0.0
    %1825 = vmatprep.subr.mxu0 0.0
    %1826 = vmatpush1.msra.mxu0 0.0
    %1827 = vmatprep.subr.mxu0 0.0
    %1828 = vmatpush1.msra.mxu0 0.0
    %1829 = vmatprep.mubr.f32.mxu0 0.0
    %1830 = vmatmul.mubr.f32.gmra.mrb[0].mxu0 %v1763
    %v1831 = vpop.f32.mrb[0].mxu0
    %v1832 = vadd.f32 0.0, %v1831
    %v1833 = vpop.f32.mrb[0].mxu0
    %1834 = vdwg.mxu0
    %v1835 = vadd.f32 %v1762, %v1832
    %v1836 = vxor.u32 %v1835, 2147483648
    %v1837 = vmul.f32 %v1836, 1.442695
    %v1838 = vpow.pop %v1837
    %v1839 = vadd.f32 %v1838, 1.0
    %v1840 = vrcp.pop %v1839
    %v1841 = vmul.f32 1.0, %v1840
    %v1842 = vtanh.pop %v1835
    %v1843 = vmul.f32 %v1841, %v1749
    %1845 = vrot.lane.b32.xlu0 %v1842, 64
    %v1846 = vpop.permute.xlu0 %1845
    %v1848 = vmul.f32 %v1841, %v1846
    %1850 = vrot.lane.b32.xlu0 %v1848, 32
    %v1851 = vpop.permute.xlu0 %1850
    %v1853 = vadd.f32 %v1843, %v1851
    %v1854 = vtanh.pop %v1853
    %1856 = vrot.lane.b32.xlu0 %v1854, 64
    %v1857 = vpop.permute.xlu0 %1856
    %v1859 = vmul.f32 %v1841, %v1857
    %1861 = vrot.lane.b32.xlu0 %v1859, 32
    %v1862 = vpop.permute.xlu0 %1861
    %s1864 = scalar_lea.vmem [#allocation4], 48
    %1865 = vst.msk [vmem:[%s1864] sm:$0xff] %vm88, %v1862
    %v1866 = vld [vmem:[%s912] sm:$0xff]
    %v1867 = vsel %vm88, %v1862, 0
    %1869 = vmatprep.subr.mxu0 0.0
    %1870 = vmatpush1.msra.mxu0 %v1137
    %1871 = vmatprep.subr.mxu0 0.0
    %1872 = vmatpush1.msra.mxu0 %v1138
    %1873 = vmatprep.subr.mxu0 0.0
    %1874 = vmatpush1.msra.mxu0 %v1139
    %1875 = vmatprep.subr.mxu0 0.0
    %1876 = vmatpush1.msra.mxu0 %v1140
    %1877 = vmatprep.subr.mxu0 0.0
    %1878 = vmatpush1.msra.mxu0 0.0
    %1879 = vmatprep.subr.mxu0 0.0
    %1880 = vmatpush1.msra.mxu0 0.0
    %1881 = vmatprep.subr.mxu0 0.0
    %1882 = vmatpush1.msra.mxu0 0.0
    %1883 = vmatprep.subr.mxu0 0.0
    %1884 = vmatpush1.msra.mxu0 0.0
    %1885 = vmatprep.subr.mxu0 0.0
    %1886 = vmatpush1.msra.mxu0 0.0
    %1887 = vmatprep.subr.mxu0 0.0
    %1888 = vmatpush1.msra.mxu0 0.0
    %1889 = vmatprep.subr.mxu0 0.0
    %1890 = vmatpush1.msra.mxu0 0.0
    %1891 = vmatprep.subr.mxu0 0.0
    %1892 = vmatpush1.msra.mxu0 0.0
    %1893 = vmatprep.subr.mxu0 0.0
    %1894 = vmatpush1.msra.mxu0 0.0
    %1895 = vmatprep.subr.mxu0 0.0
    %1896 = vmatpush1.msra.mxu0 0.0
    %1897 = vmatprep.subr.mxu0 0.0
    %1898 = vmatpush1.msra.mxu0 0.0
    %1899 = vmatprep.subr.mxu0 0.0
    %1900 = vmatpush1.msra.mxu0 0.0
    %1901 = vmatprep.subr.mxu0 0.0
    %1902 = vmatpush1.msra.mxu0 0.0
    %1903 = vmatprep.subr.mxu0 0.0
    %1904 = vmatpush1.msra.mxu0 0.0
    %1905 = vmatprep.subr.mxu0 0.0
    %1906 = vmatpush1.msra.mxu0 0.0
    %1907 = vmatprep.subr.mxu0 0.0
    %1908 = vmatpush1.msra.mxu0 0.0
    %1909 = vmatprep.subr.mxu0 0.0
    %1910 = vmatpush1.msra.mxu0 0.0
    %1911 = vmatprep.subr.mxu0 0.0
    %1912 = vmatpush1.msra.mxu0 0.0
    %1913 = vmatprep.subr.mxu0 0.0
    %1914 = vmatpush1.msra.mxu0 0.0
    %1915 = vmatprep.subr.mxu0 0.0
    %1916 = vmatpush1.msra.mxu0 0.0
    %1917 = vmatprep.subr.mxu0 0.0
    %1918 = vmatpush1.msra.mxu0 0.0
    %1919 = vmatprep.subr.mxu0 0.0
    %1920 = vmatpush1.msra.mxu0 0.0
    %1921 = vmatprep.subr.mxu0 0.0
    %1922 = vmatpush1.msra.mxu0 0.0
    %1923 = vmatprep.subr.mxu0 0.0
    %1924 = vmatpush1.msra.mxu0 0.0
    %1925 = vmatprep.subr.mxu0 0.0
    %1926 = vmatpush1.msra.mxu0 0.0
    %1927 = vmatprep.subr.mxu0 0.0
    %1928 = vmatpush1.msra.mxu0 0.0
    %1929 = vmatprep.subr.mxu0 0.0
    %1930 = vmatpush1.msra.mxu0 0.0
    %1931 = vmatprep.subr.mxu0 0.0
    %1932 = vmatpush1.msra.mxu0 0.0
    %1933 = vmatprep.mubr.f32.mxu0 0.0
    %1934 = vmatmul.mubr.f32.gmra.mrb[0].mxu0 %v1867
    %v1935 = vpop.f32.mrb[0].mxu0
    %v1936 = vadd.f32 0.0, %v1935
    %v1937 = vpop.f32.mrb[0].mxu0
    %1938 = vdwg.mxu0
    %v1939 = vadd.f32 %v1866, %v1936
    %v1940 = vxor.u32 %v1939, 2147483648
    %v1941 = vmul.f32 %v1940, 1.442695
    %v1942 = vpow.pop %v1941
    %v1943 = vadd.f32 %v1942, 1.0
    %v1944 = vrcp.pop %v1943
    %v1945 = vmul.f32 1.0, %v1944
    %v1946 = vtanh.pop %v1939
    %v1947 = vmul.f32 %v1945, %v1853
    %1949 = vrot.lane.b32.xlu0 %v1946, 64
    %v1950 = vpop.permute.xlu0 %1949
    %v1952 = vmul.f32 %v1945, %v1950
    %1954 = vrot.lane.b32.xlu0 %v1952, 32
    %v1955 = vpop.permute.xlu0 %1954
    %v1957 = vadd.f32 %v1947, %v1955
    %v1958 = vtanh.pop %v1957
    %1960 = vrot.lane.b32.xlu0 %v1958, 64
    %v1961 = vpop.permute.xlu0 %1960
    %v1963 = vmul.f32 %v1945, %v1961
    %1965 = vrot.lane.b32.xlu0 %v1963, 32
    %v1966 = vpop.permute.xlu0 %1965
    %s1968 = scalar_lea.vmem [#allocation4], 56
    %1969 = vst.msk [vmem:[%s1968] sm:$0xff] %vm88, %v1966
    %v1970 = vld [vmem:[#allocation4] sm:$0xff]
    %v1971 = vld [vmem:[#allocation4 + $0x8] sm:$0xff]
    %v1972 = vld [vmem:[#allocation4 + $0x10] sm:$0xff]
    %v1973 = vld [vmem:[#allocation4 + $0x18] sm:$0xff]
    %v1974 = vld [vmem:[#allocation4 + $0x20] sm:$0xff]
    %v1975 = vld [vmem:[#allocation4 + $0x28] sm:$0xff]
    %v1976 = vld [vmem:[#allocation4 + $0x30] sm:$0xff]
    %v1977 = vld [vmem:[#allocation4 + $0x38] sm:$0xff]
    %v1978 = vpack.c.bf16 %v1971, %v1970
    %v1979 = vpack.c.bf16 %v1973, %v1972
    %v1980 = vpack.c.bf16 %v1975, %v1974
    %v1981 = vpack.c.bf16 %v1977, %v1976
    %v1982 = vld [vmem:[%s8] sm:$0xf]
    %v1983 = vld [vmem:[%s8 + $0x4] sm:$0xf]
    %v1984 = vld [vmem:[%s8 + $0x8] sm:$0xf]
    %v1985 = vld [vmem:[%s8 + $0xc] sm:$0xf]
    %v1986 = vld [vmem:[%s9] sm:$0x1]
    %v1988 = vlaneseq
    %v1989 = vshrl.u32 %v1988, 7
    %v1990 = vsub.s32 0, %v1989
    %v1991 = vrot.slane %v1986, %v1990
    %v1997 = vunpack.c.l.b16 %v1982
    %v1998 = vunpack.c.l.b16 %v1983
    %v1999 = vunpack.c.l.b16 %v1984
    %v2000 = vunpack.c.l.b16 %v1985
    %v2001 = vpack.c.b16 %v1998, %v1997
    %v2002 = vpack.c.b16 %v2000, %v1999
    %v2006 = vsel %vm88, %v1978, 0
    %v2009 = vsel %vm88, %v1979, 0
    %v2012 = vsel %vm88, %v1980, 0
    %v2015 = vsel %vm88, %v1981, 0
    %2017 = vmatprep.subr.bf16.mxu0 0
    %2018 = vmatpush1.bf16.msra.mxu0 %v2001
    %2019 = vmatprep.subr.bf16.mxu0 0
    %2020 = vmatpush1.bf16.msra.mxu0 %v2002
    %2021 = vmatprep.subr.bf16.mxu0 0
    %2022 = vmatpush1.bf16.msra.mxu0 0
    %2023 = vmatprep.subr.bf16.mxu0 0
    %2024 = vmatpush1.bf16.msra.mxu0 0
    %2025 = vmatprep.subr.bf16.mxu0 0
    %2026 = vmatpush1.bf16.msra.mxu0 0
    %2027 = vmatprep.subr.bf16.mxu0 0
    %2028 = vmatpush1.bf16.msra.mxu0 0
    %2029 = vmatprep.subr.bf16.mxu0 0
    %2030 = vmatpush1.bf16.msra.mxu0 0
    %2031 = vmatprep.subr.bf16.mxu0 0
    %2032 = vmatpush1.bf16.msra.mxu0 0
    %2033 = vmatprep.subr.bf16.mxu0 0
    %2034 = vmatpush1.bf16.msra.mxu0 0
    %2035 = vmatprep.subr.bf16.mxu0 0
    %2036 = vmatpush1.bf16.msra.mxu0 0
    %2037 = vmatprep.subr.bf16.mxu0 0
    %2038 = vmatpush1.bf16.msra.mxu0 0
    %2039 = vmatprep.subr.bf16.mxu0 0
    %2040 = vmatpush1.bf16.msra.mxu0 0
    %2041 = vmatprep.subr.bf16.mxu0 0
    %2042 = vmatpush1.bf16.msra.mxu0 0
    %2043 = vmatprep.subr.bf16.mxu0 0
    %2044 = vmatpush1.bf16.msra.mxu0 0
    %2045 = vmatprep.subr.bf16.mxu0 0
    %2046 = vmatpush1.bf16.msra.mxu0 0
    %2047 = vmatprep.subr.bf16.mxu0 0
    %2048 = vmatpush1.bf16.msra.mxu0 0
    %2049 = vmatprep.mubr.bf16.mxu0 0
    %2050 = vmatmul.mubr.bf16.gmra.mrb[0].mxu0 %v2006
    %v2051 = vpop.f32.mrb[0].mxu0
    %v2052 = vadd.f32 %v1991, %v2051
    %v2053 = vpop.f32.mrb[0].mxu0
    %v2054 = vpop.f32.mrb[0].mxu0
    %v2055 = vadd.f32 %v1991, %v2054
    %v2056 = vpop.f32.mrb[0].mxu0
    %2057 = vmatprep.mubr.bf16.mxu0 0
    %2058 = vmatmul.mubr.bf16.gmra.mrb[0].mxu0 %v2009
    %v2059 = vpop.f32.mrb[0].mxu0
    %v2060 = vadd.f32 %v1991, %v2059
    %v2061 = vpop.f32.mrb[0].mxu0
    %v2062 = vpop.f32.mrb[0].mxu0
    %v2063 = vadd.f32 %v1991, %v2062
    %v2064 = vpop.f32.mrb[0].mxu0
    %2065 = vmatprep.mubr.bf16.mxu0 0
    %2066 = vmatmul.mubr.bf16.gmra.mrb[0].mxu0 %v2012
    %v2067 = vpop.f32.mrb[0].mxu0
    %v2068 = vadd.f32 %v1991, %v2067
    %v2069 = vpop.f32.mrb[0].mxu0
    %v2070 = vpop.f32.mrb[0].mxu0
    %v2071 = vadd.f32 %v1991, %v2070
    %v2072 = vpop.f32.mrb[0].mxu0
    %2073 = vmatprep.mubr.bf16.mxu0 0
    %2074 = vmatmul.mubr.bf16.gmra.mrb[0].mxu0 %v2015
    %v2075 = vpop.f32.mrb[0].mxu0
    %v2076 = vadd.f32 %v1991, %v2075
    %v2077 = vpop.f32.mrb[0].mxu0
    %v2078 = vpop.f32.mrb[0].mxu0
    %v2079 = vadd.f32 %v1991, %v2078
    %v2080 = vpop.f32.mrb[0].mxu0
    %2081 = vdwg.mxu0
    %vm2082 = vcmask 523264
    %v2083 = vsel %vm2082, %v2052, -inf
    %2084 = vmax.xlane.f32.xlu0 %v2083
    %v2085 = vpop.xlane.xlu0 %2084
    %v2086 = vsel %vm2082, %v2055, -inf
    %2087 = vmax.xlane.f32.xlu0 %v2086
    %v2088 = vpop.xlane.xlu0 %2087
    %v2089 = vsel %vm2082, %v2060, -inf
    %2090 = vmax.xlane.f32.xlu0 %v2089
    %v2091 = vpop.xlane.xlu0 %2090
    %v2092 = vsel %vm2082, %v2063, -inf
    %2093 = vmax.xlane.f32.xlu0 %v2092
    %v2094 = vpop.xlane.xlu0 %2093
    %v2095 = vsel %vm2082, %v2068, -inf
    %2096 = vmax.xlane.f32.xlu0 %v2095
    %v2097 = vpop.xlane.xlu0 %2096
    %v2098 = vsel %vm2082, %v2071, -inf
    %2099 = vmax.xlane.f32.xlu0 %v2098
    %v2100 = vpop.xlane.xlu0 %2099
    %v2101 = vsel %vm2082, %v2076, -inf
    %2102 = vmax.xlane.f32.xlu0 %v2101
    %v2103 = vpop.xlane.xlu0 %2102
    %v2104 = vsel %vm2082, %v2079, -inf
    %2105 = vmax.xlane.f32.xlu0 %v2104
    %v2106 = vpop.xlane.xlu0 %2105
    %v2107 = vsub.f32 %v2052, %v2085
    %v2108 = vsub.f32 %v2055, %v2088
    %v2109 = vsub.f32 %v2060, %v2091
    %v2110 = vsub.f32 %v2063, %v2094
    %v2111 = vsub.f32 %v2068, %v2097
    %v2112 = vsub.f32 %v2071, %v2100
    %v2113 = vsub.f32 %v2076, %v2103
    %v2114 = vsub.f32 %v2079, %v2106
    %v2115 = vmul.f32 %v2107, 1.442695
    %v2116 = vpow.pop %v2115
    %v2117 = vmul.f32 %v2108, 1.442695
    %v2118 = vpow.pop %v2117
    %v2119 = vmul.f32 %v2109, 1.442695
    %v2120 = vpow.pop %v2119
    %v2121 = vmul.f32 %v2110, 1.442695
    %v2122 = vpow.pop %v2121
    %v2123 = vmul.f32 %v2111, 1.442695
    %v2124 = vpow.pop %v2123
    %v2125 = vmul.f32 %v2112, 1.442695
    %v2126 = vpow.pop %v2125
    %v2127 = vmul.f32 %v2113, 1.442695
    %v2128 = vpow.pop %v2127
    %v2129 = vmul.f32 %v2114, 1.442695
    %v2130 = vpow.pop %v2129
    %v2131 = vsel %vm2082, %v2116, 0.0
    %2132 = vadd.xlane.f32.xlu0 %v2131
    %v2133 = vpop.xlane.xlu0 %2132
    %v2134 = vsel %vm2082, %v2118, 0.0
    %2135 = vadd.xlane.f32.xlu0 %v2134
    %v2136 = vpop.xlane.xlu0 %2135
    %v2137 = vsel %vm2082, %v2120, 0.0
    %2138 = vadd.xlane.f32.xlu0 %v2137
    %v2139 = vpop.xlane.xlu0 %2138
    %v2140 = vsel %vm2082, %v2122, 0.0
    %2141 = vadd.xlane.f32.xlu0 %v2140
    %v2142 = vpop.xlane.xlu0 %2141
    %v2143 = vsel %vm2082, %v2124, 0.0
    %2144 = vadd.xlane.f32.xlu0 %v2143
    %v2145 = vpop.xlane.xlu0 %2144
    %v2146 = vsel %vm2082, %v2126, 0.0
    %2147 = vadd.xlane.f32.xlu0 %v2146
    %v2148 = vpop.xlane.xlu0 %2147
    %v2149 = vsel %vm2082, %v2128, 0.0
    %2150 = vadd.xlane.f32.xlu0 %v2149
    %v2151 = vpop.xlane.xlu0 %2150
    %v2152 = vsel %vm2082, %v2130, 0.0
    %2153 = vadd.xlane.f32.xlu0 %v2152
    %v2154 = vpop.xlane.xlu0 %2153
    %v2155 = vlog2.pop %v2133
    %v2156 = vmul.f32 %v2155, 0.6931472
    %v2157 = vlog2.pop %v2136
    %v2158 = vmul.f32 %v2157, 0.6931472
    %v2159 = vlog2.pop %v2139
    %v2160 = vmul.f32 %v2159, 0.6931472
    %v2161 = vlog2.pop %v2142
    %v2162 = vmul.f32 %v2161, 0.6931472
    %v2163 = vlog2.pop %v2145
    %v2164 = vmul.f32 %v2163, 0.6931472
    %v2165 = vlog2.pop %v2148
    %v2166 = vmul.f32 %v2165, 0.6931472
    %v2167 = vlog2.pop %v2151
    %v2168 = vmul.f32 %v2167, 0.6931472
    %v2169 = vlog2.pop %v2154
    %v2170 = vmul.f32 %v2169, 0.6931472
    %v2171 = vadd.f32 %v2085, %v2156
    %v2172 = vadd.f32 %v2088, %v2158
    %v2173 = vadd.f32 %v2091, %v2160
    %v2174 = vadd.f32 %v2094, %v2162
    %v2175 = vadd.f32 %v2097, %v2164
    %v2176 = vadd.f32 %v2100, %v2166
    %v2177 = vadd.f32 %v2103, %v2168
    %v2178 = vadd.f32 %v2106, %v2170
    %v2179 = vlaneseq
    %v2180 = vand.u32 %v2179, 127
    %v2181 = vld [vmem:[%s1] sm:$0xff]
    %v2182 = vld [vmem:[%s1 + $0x8] sm:$0xff]
    %v2183 = vld [vmem:[%s1 + $0x10] sm:$0xff]
    %v2184 = vld [vmem:[%s1 + $0x18] sm:$0xff]
    %v2185 = vld [vmem:[%s1 + $0x20] sm:$0xff]
    %v2186 = vld [vmem:[%s1 + $0x28] sm:$0xff]
    %v2187 = vld [vmem:[%s1 + $0x30] sm:$0xff]
    %v2188 = vld [vmem:[%s1 + $0x38] sm:$0xff]
    %2189 = vset.pattern.permute.xlu0 0
    %2190 = vperm.xlu0 %2189, %v2181
    %v2191 = vpop.permute.xlu0 %2190
    %2192 = vset.pattern.permute.xlu0 0
    %2193 = vperm.xlu0 %2192, %v2182
    %v2194 = vpop.permute.xlu0 %2193
    %2195 = vset.pattern.permute.xlu0 0
    %2196 = vperm.xlu0 %2195, %v2183
    %v2197 = vpop.permute.xlu0 %2196
    %2198 = vset.pattern.permute.xlu0 0
    %2199 = vperm.xlu0 %2198, %v2184
    %v2200 = vpop.permute.xlu0 %2199
    %2201 = vset.pattern.permute.xlu0 0
    %2202 = vperm.xlu0 %2201, %v2185
    %v2203 = vpop.permute.xlu0 %2202
    %2204 = vset.pattern.permute.xlu0 0
    %2205 = vperm.xlu0 %2204, %v2186
    %v2206 = vpop.permute.xlu0 %2205
    %2207 = vset.pattern.permute.xlu0 0
    %2208 = vperm.xlu0 %2207, %v2187
    %v2209 = vpop.permute.xlu0 %2208
    %2210 = vset.pattern.permute.xlu0 0
    %2211 = vperm.xlu0 %2210, %v2188
    %v2212 = vpop.permute.xlu0 %2211
    %vm2213 = vcmp.eq.s32.totalorder %v2180, %v2191
    %vm2214 = vcmp.eq.s32.totalorder %v2180, %v2194
    %vm2215 = vcmp.eq.s32.totalorder %v2180, %v2197
    %vm2216 = vcmp.eq.s32.totalorder %v2180, %v2200
    %vm2217 = vcmp.eq.s32.totalorder %v2180, %v2203
    %vm2218 = vcmp.eq.s32.totalorder %v2180, %v2206
    %vm2219 = vcmp.eq.s32.totalorder %v2180, %v2209
    %vm2220 = vcmp.eq.s32.totalorder %v2180, %v2212
    %v2221 = vsel %vm2213, %v2052, 0.0
    %v2222 = vsel %vm2214, %v2055, 0.0
    %v2223 = vsel %vm2215, %v2060, 0.0
    %v2224 = vsel %vm2216, %v2063, 0.0
    %v2225 = vsel %vm2217, %v2068, 0.0
    %v2226 = vsel %vm2218, %v2071, 0.0
    %v2227 = vsel %vm2219, %v2076, 0.0
    %v2228 = vsel %vm2220, %v2079, 0.0
    %v2229 = vsel %vm2082, %v2221, 0.0
    %2230 = vadd.xlane.f32.xlu0 %v2229
    %v2231 = vpop.xlane.xlu0 %2230
    %v2232 = vsel %vm2082, %v2222, 0.0
    %2233 = vadd.xlane.f32.xlu0 %v2232
    %v2234 = vpop.xlane.xlu0 %2233
    %v2235 = vsel %vm2082, %v2223, 0.0
    %2236 = vadd.xlane.f32.xlu0 %v2235
    %v2237 = vpop.xlane.xlu0 %2236
    %v2238 = vsel %vm2082, %v2224, 0.0
    %2239 = vadd.xlane.f32.xlu0 %v2238
    %v2240 = vpop.xlane.xlu0 %2239
    %v2241 = vsel %vm2082, %v2225, 0.0
    %2242 = vadd.xlane.f32.xlu0 %v2241
    %v2243 = vpop.xlane.xlu0 %2242
    %v2244 = vsel %vm2082, %v2226, 0.0
    %2245 = vadd.xlane.f32.xlu0 %v2244
    %v2246 = vpop.xlane.xlu0 %2245
    %v2247 = vsel %vm2082, %v2227, 0.0
    %2248 = vadd.xlane.f32.xlu0 %v2247
    %v2249 = vpop.xlane.xlu0 %2248
    %v2250 = vsel %vm2082, %v2228, 0.0
    %2251 = vadd.xlane.f32.xlu0 %v2250
    %v2252 = vpop.xlane.xlu0 %2251
    %v2253 = vsub.f32 %v2171, %v2231
    %v2254 = vsub.f32 %v2172, %v2234
    %v2255 = vsub.f32 %v2173, %v2237
    %v2256 = vsub.f32 %v2174, %v2240
    %v2257 = vsub.f32 %v2175, %v2243
    %v2258 = vsub.f32 %v2176, %v2246
    %v2259 = vsub.f32 %v2177, %v2249
    %v2260 = vsub.f32 %v2178, %v2252
    %vm2261 = vcmask 7168
    %v2262 = vsel %vm2261, %v2253, 0.0
    %v2263 = vsel %vm2261, %v2254, 0.0
    %v2264 = vadd.f32 %v2262, %v2263
    %v2265 = vsel %vm2261, %v2255, 0.0
    %v2266 = vadd.f32 %v2264, %v2265
    %v2267 = vsel %vm2261, %v2256, 0.0
    %v2268 = vadd.f32 %v2266, %v2267
    %v2269 = vsel %vm2261, %v2257, 0.0
    %v2270 = vadd.f32 %v2268, %v2269
    %v2271 = vsel %vm2261, %v2258, 0.0
    %v2272 = vadd.f32 %v2270, %v2271
    %v2273 = vsel %vm2261, %v2259, 0.0
    %v2274 = vadd.f32 %v2272, %v2273
    %v2275 = vsel %vm2261, %v2260, 0.0
    %v2276 = vadd.f32 %v2274, %v2275
    %2277 = vadd.xlane.f32.xlu0 %v2276
    %v2278 = vpop.xlane.xlu0 %2277
    %v2279 = vrot.slane %v2278, 4
    %v2280 = vadd.f32 %v2278, %v2279
    %v2281 = vrot.slane %v2280, 2
    %v2282 = vadd.f32 %v2280, %v2281
    %v2283 = vrot.slane %v2282, 1
    %v2284 = vadd.f32 %v2282, %v2283
    %s2285 = vtos %v2284
    %v2286 = vstv %s2285
    %vm2287 = vcmask 0
    %2288 = vst.msk [vmem:[#allocation5] sm:$0x1] %vm2287, %v2286
    // Predicated region
    $region42: #{tpu_custom_call.1} parent=1 // pred_check
      _
    $region43: #{tpu_custom_call.1} parent=1 // pred_check_branch
      %2290 = sbr.rel (0) target = $region45
    $region44: #{tpu_custom_call.1} parent=1 // pred_region
      %s2292 = ssub.s32 16, 16
      %2293 = vsyncadd [#allocation6], %s2292
      %s2295 = sshll.u32 [#allocation5], 4
      %s2296 = int_to_ptr.vmem [resolvable:$true] %s2295
      %2298 = dma.vmem_to_hbm [thread:$0]  %s2296, 16, %s10, [#allocation6]
    $region45: #{tpu_custom_call.1} parent=1 // pred_fallthru
      _
    // Predicated region
    $region46: #{tpu_custom_call.1} parent=1 // pred_check
      _
    $region47: #{tpu_custom_call.1} parent=1 // pred_check_branch
      %2300 = sbr.rel (0) target = $region49
    $region48: #{tpu_custom_call.1} parent=1 // pred_region
      %2301 = dma.done [#allocation6], 16
    $region49: #{tpu_custom_call.1} parent=1 // pred_fallthru
      _
    %2302 = vsyncpa [#allocation6], 1

</llo_original>
